<compile_context>
chip_gen: v7x
topology: tpu7x:2x2x1
jax: 0.10.0
libtpu: 0.0.40
codegen_flags: <defaults>
</compile_context>

<pallas_src>
import functools

import jax
import jax.numpy as jnp
from jax.experimental import pallas as pl
from jax.experimental.pallas import tpu as pltpu

DILATIONS = (1, 2, 3, 4, 5)    # preprocess (d=1) + 4 blocks (d = idx + 2)
# Halo rows (per side) still needed AFTER layer i so later layers' taps stay inside
# recomputed data: NEEDS[i] = sum(DILATIONS[i+1:])  ->  (14, 12, 9, 5, 0)
NEEDS = tuple(sum(DILATIONS[i + 1:]) for i in range(len(DILATIONS)))
HALO = 16                      # >= sum(DILATIONS)=15, multiple of 8 (sublane aligned)
assert HALO >= sum(DILATIONS)


def _round_up(x, m):
    return (x + m - 1) // m * m


def _elu(y):
    # ELU(alpha=1). min() keeps exp() off large positives on the untaken branch.
    return jnp.where(y > 0.0, y, jnp.exp(jnp.minimum(y, 0.0)) - 1.0)


# ----------------------------------------------------------------------------
# Fused kernel: 5 dilated Conv1d (k=3, "same" zero padding) + bias + ELU layers
# over one (batch, L-tile) grid cell, with recompute-halo tiling.
# ----------------------------------------------------------------------------
def local_features_kernel(x_ref, w0_ref, wr_ref, b_ref, o_ref, act_ref, *, tl, length):
    # x_ref  : (1, TLH, in_size)   input slab = tile rows + HALO halo each side
    # w0_ref : (3, in_size, size)  layer-0 taps (f32), (K, Cin, Cout)
    # wr_ref : (12, size, size)    layers 1..4 taps (bf16), flattened (layer, tap)
    # b_ref  : (5, 1, size)        f32 biases
    # o_ref  : (1, tl, size)       output tile
    # act_ref: (TLH, size) bf16 scratch.  Never zero-initialized: every row a later
    #          layer reads is rewritten this grid step; out-of-sequence rows are
    #          masked to zero (== Conv1d zero padding for every layer).
    tlh = tl + 2 * HALO
    t = pl.program_id(1)

    # Global-row validity mask for this tile (rows outside [0, length) must be zero
    # in every intermediate layer because Conv1d zero-pads each layer's input).
    row0 = t * tl - HALO
    gid = jax.lax.broadcasted_iota(jnp.int32, (tlh, 1), 0) + row0
    valid = jnp.logical_and(gid >= 0, gid < length)            # (TLH, 1) bool

    # ---- layer 0: Conv1d(in_size, size, 3, dilation=1, padding=1) + ELU ----
    s, n = HALO - NEEDS[0], tl + 2 * NEEDS[0]
    x = x_ref[0]                                               # (TLH, in_size)
    acc = jnp.dot(x[s - 1:s - 1 + n], w0_ref[0], preferred_element_type=jnp.float32)
    acc += jnp.dot(x[s:s + n],         w0_ref[1], preferred_element_type=jnp.float32)
    acc += jnp.dot(x[s + 1:s + 1 + n], w0_ref[2], preferred_element_type=jnp.float32)
    val = jnp.where(valid[s:s + n], _elu(acc + b_ref[0]), 0.0)
    act_ref[pl.ds(s, n), :] = val.astype(act_ref.dtype)

    # ---- layers 1..4: Conv1d(size, size, 3, dilation=d, padding=d) + ELU ----
    for j, d in enumerate(DILATIONS[1:]):                      # static unroll, 4 layers
        s, n = HALO - NEEDS[j + 1], tl + 2 * NEEDS[j + 1]
        w = 3 * j
        acc = jnp.dot(act_ref[pl.ds(s - d, n), :], wr_ref[w],
                      preferred_element_type=jnp.float32)
        acc += jnp.dot(act_ref[pl.ds(s, n), :], wr_ref[w + 1],
                       preferred_element_type=jnp.float32)
        acc += jnp.dot(act_ref[pl.ds(s + d, n), :], wr_ref[w + 2],
                       preferred_element_type=jnp.float32)
        val = _elu(acc + b_ref[j + 1])
        if j < 3:
            val = jnp.where(valid[s:s + n], val, 0.0)
            act_ref[pl.ds(s, n), :] = val.astype(act_ref.dtype)
        else:
            o_ref[0] = val.astype(o_ref.dtype)                 # last layer -> output


def local_features_pallas(x_nlc, w0, w_rest, biases, size, *, tile_l=256):
    """x_nlc: (N, L, in_size); w0: (3, in_size, size) f32; w_rest: (12, size, size)
    bf16; biases: (5, 1, size) f32.  Returns (N, L, size) in x_nlc.dtype."""
    n, length, in_size = x_nlc.shape
    tl = min(_round_up(tile_l, 8), _round_up(length, 8))       # sublane-aligned tile
    num_tiles = -(-length // tl)
    lpad = num_tiles * tl
    tlh = tl + 2 * HALO

    # Glue (cheap, in_size is tiny): zero-pad to the halo'd, tile-aligned length and
    # gather overlapping per-tile input slabs so BlockSpec blocks never overlap.
    x_p = jnp.pad(x_nlc, ((0, 0), (HALO, HALO + lpad - length), (0, 0)))
    rows = jnp.arange(num_tiles)[:, None] * tl + jnp.arange(tlh)[None, :]
    x_slabs = x_p[:, rows, :].reshape(n * num_tiles, tlh, in_size)

    kernel = functools.partial(local_features_kernel, tl=tl, length=length)
    out_p = pl.pallas_call(
        kernel,
        out_shape=jax.ShapeDtypeStruct((n, lpad, size), x_nlc.dtype),
        grid_spec=pltpu.PrefetchScalarGridSpec(
            num_scalar_prefetch=0,
            grid=(n, num_tiles),                               # (batch, L-tiles)
            in_specs=[
                pl.BlockSpec((1, tlh, in_size),
                             lambda b, t: (b * num_tiles + t, 0, 0)),
                pl.BlockSpec((3, in_size, size), lambda b, t: (0, 0, 0)),  # resident
                pl.BlockSpec((12, size, size), lambda b, t: (0, 0, 0)),    # resident
                pl.BlockSpec((5, 1, size), lambda b, t: (0, 0, 0)),        # resident
            ],
            out_specs=pl.BlockSpec((1, tl, size), lambda b, t: (b, t, 0)),
            scratch_shapes=[pltpu.VMEM((tlh, size), jnp.bfloat16)],
        ),
        compiler_params=pltpu.CompilerParams(
            dimension_semantics=("parallel", "parallel"),      # megacore both axes
            vmem_limit_bytes=32 * 1024 * 1024,                 # explicit headroom
        ),
    )(x_slabs, w0, w_rest, biases)
    return out_p[:, :length, :]


# ----------------------------------------------------------------------------
# Parameter setup (glue, precomputed ONCE — hoisted out of the forward path)
# ----------------------------------------------------------------------------
def spectral_normalize(w_oik, n_iter=30):
    """Divide conv weight (Cout, Cin, K) by the spectral norm of its (Cout, Cin*K)
    view (deterministic power iteration), mirroring torch spectral_norm."""
    cout = w_oik.shape[0]
    mat = w_oik.reshape(cout, -1)
    u = jnp.ones((cout,), mat.dtype)
    for _ in range(n_iter):
        v = mat.T @ u
        v = v / (jnp.linalg.norm(v) + 1e-12)
        u = mat @ v
        u = u / (jnp.linalg.norm(u) + 1e-12)
    sigma = u @ (mat @ v)
    return w_oik / sigma


def init_conv(key, cout, cin, ksize):
    """Deterministic init matching PyTorch Conv1d default bounds."""
    kw, kb = jax.random.split(key)
    fan_in = cin * ksize
    bound = 1.0 / jnp.sqrt(jnp.asarray(fan_in, jnp.float32))
    w = jax.random.uniform(kw, (cout, cin, ksize), jnp.float32, -bound, bound)
    b = jax.random.uniform(kb, (cout,), jnp.float32, -bound, bound)
    return w, b


def prepare_params(raw_params):
    """raw_params: [(w_oik, bias)] * 5, layer 0 first.  Returns the effective
    per-layer weights (for the reference) and the packed kernel operands."""
    normed = [(spectral_normalize(w), b) for w, b in raw_params]
    kio = [jnp.transpose(w, (2, 1, 0)) for w, _ in normed]        # (K, Cin, Cout)
    w0 = kio[0].astype(jnp.float32)                               # Cin tiny -> keep f32
    w_rest = jnp.concatenate(kio[1:], axis=0).astype(jnp.bfloat16)  # bf16 MXU inputs
    biases = jnp.stack([b.reshape(1, -1).astype(jnp.float32) for _, b in normed])
    # Effective weights the kernel actually applies (layers 1..4 stored as bf16),
    # so the reference check isolates kernel/tiling correctness from the intended
    # bf16-weight quantization.
    eff = [normed[0]]
    eff += [(w.astype(jnp.bfloat16).astype(jnp.float32), b) for w, b in normed[1:]]
    return eff, (w0, w_rest, biases)


def local_features_forward(x_ncl, packed, size):
    """x_ncl: (N, Cin, L) like PyTorch.  Returns (N, size, L)."""
    w0, w_rest, biases = packed
    x_nlc = jnp.transpose(x_ncl, (0, 2, 1))                       # NCL -> NLC (glue)
    y_nlc = local_features_pallas(x_nlc, w0, w_rest, biases, size)
    return jnp.transpose(y_nlc, (0, 2, 1))                        # back to NCL


# ----------------------------------------------------------------------------
# Pure-JAX reference (same effective weights, via XLA conv) for correctness check
# ----------------------------------------------------------------------------
def reference_forward(x_ncl, params):
    out = x_ncl
    for (w, b), d in zip(params, DILATIONS):
        y = jax.lax.conv_general_dilated(
            out, w, window_strides=(1,), padding=[(d, d)], rhs_dilation=(d,),
            dimension_numbers=("NCH", "OIH", "NCH"))
        out = jax.nn.elu(y + b[None, :, None])
    return out


if __name__ == "__main__":
    key = jax.random.PRNGKey(0)
    N, IN_SIZE, L, SIZE = 2, 4, 16, 32
    keys = jax.random.split(key, 8)

    x = jax.random.normal(keys[0], (N, IN_SIZE, L), jnp.float32)  # NCL, like PyTorch

    # preprocess: Conv1d(in_size, size, 3, padding=1); blocks: dilation = idx + 2
    raw = [init_conv(keys[1], SIZE, IN_SIZE, 3)]
    for idx in range(4):
        raw.append(init_conv(keys[2 + idx], SIZE, SIZE, 3))
    eff, packed = prepare_params(raw)                             # hoisted precompute

    fwd = jax.jit(local_features_forward, static_argnums=2)
    out = fwd(x, packed, SIZE)
    jax.block_until_ready(out)
    assert out.shape == (N, SIZE, L), out.shape

    ref = reference_forward(x, eff)
    max_err = float(jnp.max(jnp.abs(out - ref)))
    assert jnp.allclose(out, ref, rtol=2e-2, atol=2e-2), max_err

    print("KERNEL_OK")
</pallas_src>

<mosaic_0001>
module attributes {stable_mosaic.version = 11 : i64} {
  func.func @local_features_kernel(%arg0: i32, %arg1: i32, %arg2: memref<1x48x4xf32, #tpu.memory_space<vmem>>, %arg3: memref<3x4x32xf32, #tpu.memory_space<vmem>>, %arg4: memref<12x32x32xbf16, #tpu.memory_space<vmem>>, %arg5: memref<5x1x32xf32, #tpu.memory_space<vmem>>, %arg6: memref<1x16x32xf32, #tpu.memory_space<vmem>>, %arg7: memref<48x32xbf16, #tpu.memory_space<vmem>>) attributes {dimension_semantics = [#tpu.dimension_semantics<parallel>, #tpu.dimension_semantics<parallel>], iteration_bounds = array<i64: 2, 1>, scalar_prefetch = 0 : i64, scratch_operands = 1 : i64, tpu.core_type = #tpu.core_type<tc>, window_params = [{transform_indices = @transform_0, window_bounds = array<i64: 1, 48, 4>}, {pipeline_mode = #tpu.pipeline_mode<synchronous>, transform_indices = @transform_1, window_bounds = array<i64: 3, 4, 32>}, {pipeline_mode = #tpu.pipeline_mode<synchronous>, transform_indices = @transform_2, window_bounds = array<i64: 12, 32, 32>}, {pipeline_mode = #tpu.pipeline_mode<synchronous>, transform_indices = @transform_3, window_bounds = array<i64: 5, 1, 32>}, {transform_indices = @transform_4, window_bounds = array<i64: 1, 16, 32>}]} {
    %c16_i32 = arith.constant 16 : i32
    %0 = arith.muli %arg1, %c16_i32 : i32
    %c16_i32_0 = arith.constant 16 : i32
    %1 = arith.subi %0, %c16_i32_0 : i32
    %2 = tpu.iota {dimensions = array<i32: 0>} : vector<48x1xi32>
    %3 = vector.broadcast %1 : i32 to vector<48x1xi32>
    %4 = arith.addi %2, %3 : vector<48x1xi32>
    %c0_i32 = arith.constant 0 : i32
    %5 = vector.broadcast %c0_i32 : i32 to vector<48x1xi32>
    %6 = arith.cmpi sge, %4, %5 : vector<48x1xi32>
    %c16_i32_1 = arith.constant 16 : i32
    %7 = vector.broadcast %c16_i32_1 : i32 to vector<48x1xi32>
    %8 = arith.cmpi slt, %4, %7 : vector<48x1xi32>
    %9 = arith.andi %6, %8 : vector<48x1xi1>
    %c0 = arith.constant 0 : index
    %c0_2 = arith.constant 0 : index
    %c0_3 = arith.constant 0 : index
    %10 = vector.load %arg2[%c0, %c0_2, %c0_3] : memref<1x48x4xf32, #tpu.memory_space<vmem>>, vector<1x48x4xf32>
    %11 = vector.shape_cast %10 : vector<1x48x4xf32> to vector<48x4xf32>
    %12 = vector.extract_strided_slice %11 {offsets = [1, 0], sizes = [44, 4], strides = [1, 1]} : vector<48x4xf32> to vector<44x4xf32>
    %c0_4 = arith.constant 0 : index
    %c0_5 = arith.constant 0 : index
    %c0_6 = arith.constant 0 : index
    %13 = vector.load %arg3[%c0_4, %c0_5, %c0_6] : memref<3x4x32xf32, #tpu.memory_space<vmem>>, vector<1x4x32xf32>
    %14 = vector.shape_cast %13 : vector<1x4x32xf32> to vector<4x32xf32>
    %cst = arith.constant dense<0.000000e+00> : vector<44x32xf32>
    %15 = tpu.matmul %12, %14, %cst {dimension_numbers = #tpu.dot_dimension_numbers<[1], [0], [0], [1], [0, 0, 1, 1], [], []>} : vector<44x4xf32>, vector<4x32xf32>, vector<44x32xf32> -> vector<44x32xf32>
    %16 = vector.extract_strided_slice %11 {offsets = [2, 0], sizes = [44, 4], strides = [1, 1]} : vector<48x4xf32> to vector<44x4xf32>
    %c1 = arith.constant 1 : index
    %c0_7 = arith.constant 0 : index
    %c0_8 = arith.constant 0 : index
    %17 = vector.load %arg3[%c1, %c0_7, %c0_8] : memref<3x4x32xf32, #tpu.memory_space<vmem>>, vector<1x4x32xf32>
    %18 = vector.shape_cast %17 : vector<1x4x32xf32> to vector<4x32xf32>
    %cst_9 = arith.constant dense<0.000000e+00> : vector<44x32xf32>
    %19 = tpu.matmul %16, %18, %cst_9 {dimension_numbers = #tpu.dot_dimension_numbers<[1], [0], [0], [1], [0, 0, 1, 1], [], []>} : vector<44x4xf32>, vector<4x32xf32>, vector<44x32xf32> -> vector<44x32xf32>
    %20 = arith.addf %15, %19 : vector<44x32xf32>
    %21 = vector.extract_strided_slice %11 {offsets = [3, 0], sizes = [44, 4], strides = [1, 1]} : vector<48x4xf32> to vector<44x4xf32>
    %c2 = arith.constant 2 : index
    %c0_10 = arith.constant 0 : index
    %c0_11 = arith.constant 0 : index
    %22 = vector.load %arg3[%c2, %c0_10, %c0_11] : memref<3x4x32xf32, #tpu.memory_space<vmem>>, vector<1x4x32xf32>
    %23 = vector.shape_cast %22 : vector<1x4x32xf32> to vector<4x32xf32>
    %cst_12 = arith.constant dense<0.000000e+00> : vector<44x32xf32>
    %24 = tpu.matmul %21, %23, %cst_12 {dimension_numbers = #tpu.dot_dimension_numbers<[1], [0], [0], [1], [0, 0, 1, 1], [], []>} : vector<44x4xf32>, vector<4x32xf32>, vector<44x32xf32> -> vector<44x32xf32>
    %25 = arith.addf %20, %24 : vector<44x32xf32>
    %26 = vector.extract_strided_slice %9 {offsets = [2, 0], sizes = [44, 1], strides = [1, 1]} : vector<48x1xi1> to vector<44x1xi1>
    %c0_13 = arith.constant 0 : index
    %c0_14 = arith.constant 0 : index
    %c0_15 = arith.constant 0 : index
    %27 = vector.load %arg5[%c0_13, %c0_14, %c0_15] : memref<5x1x32xf32, #tpu.memory_space<vmem>>, vector<1x1x32xf32>
    %28 = vector.shape_cast %27 : vector<1x1x32xf32> to vector<1x32xf32>
    %29 = vector.broadcast %28 : vector<1x32xf32> to vector<44x32xf32>
    %30 = arith.addf %25, %29 : vector<44x32xf32>
    %cst_16 = arith.constant 0.000000e+00 : f32
    %31 = vector.broadcast %cst_16 : f32 to vector<44x32xf32>
    %32 = arith.cmpf ogt, %30, %31 : vector<44x32xf32>
    %cst_17 = arith.constant 0.000000e+00 : f32
    %33 = vector.broadcast %cst_17 : f32 to vector<44x32xf32>
    %34 = arith.minimumf %30, %33 : vector<44x32xf32>
    %35 = math.exp %34 : vector<44x32xf32>
    %cst_18 = arith.constant 1.000000e+00 : f32
    %36 = vector.broadcast %cst_18 : f32 to vector<44x32xf32>
    %37 = arith.subf %35, %36 : vector<44x32xf32>
    %38 = arith.select %32, %30, %37 : vector<44x32xi1>, vector<44x32xf32>
    %cst_19 = arith.constant 0.000000e+00 : f32
    %39 = vector.shape_cast %26 : vector<44x1xi1> to vector<44x1xi1>
    %40 = vector.broadcast %39 : vector<44x1xi1> to vector<44x32xi1>
    %41 = vector.broadcast %cst_19 : f32 to vector<44x32xf32>
    %42 = arith.select %40, %38, %41 : vector<44x32xi1>, vector<44x32xf32>
    %43 = arith.truncf %42 : vector<44x32xf32> to vector<44x32xbf16>
    %c2_20 = arith.constant 2 : index
    %c0_21 = arith.constant 0 : index
    %44 = vector.load %arg7[%c2_20, %c0_21] : memref<48x32xbf16, #tpu.memory_space<vmem>>, vector<44x32xbf16>
    tpu.vector_store %arg7[%c2_20, %c0_21], %43 {strides = array<i32>} : memref<48x32xbf16, #tpu.memory_space<vmem>>, vector<44x32xbf16>,
    %c2_22 = arith.constant 2 : index
    %c0_23 = arith.constant 0 : index
    %45 = vector.load %arg7[%c2_22, %c0_23] : memref<48x32xbf16, #tpu.memory_space<vmem>>, vector<40x32xbf16>
    %c0_24 = arith.constant 0 : index
    %c0_25 = arith.constant 0 : index
    %c0_26 = arith.constant 0 : index
    %46 = vector.load %arg4[%c0_24, %c0_25, %c0_26] : memref<12x32x32xbf16, #tpu.memory_space<vmem>>, vector<1x32x32xbf16>
    %47 = vector.shape_cast %46 : vector<1x32x32xbf16> to vector<32x32xbf16>
    %cst_27 = arith.constant dense<0.000000e+00> : vector<40x32xf32>
    %48 = tpu.matmul %45, %47, %cst_27 {dimension_numbers = #tpu.dot_dimension_numbers<[1], [0], [0], [1], [0, 0, 1, 1], [], []>} : vector<40x32xbf16>, vector<32x32xbf16>, vector<40x32xf32> -> vector<40x32xf32>
    %c4 = arith.constant 4 : index
    %c0_28 = arith.constant 0 : index
    %49 = vector.load %arg7[%c4, %c0_28] : memref<48x32xbf16, #tpu.memory_space<vmem>>, vector<40x32xbf16>
    %c1_29 = arith.constant 1 : index
    %c0_30 = arith.constant 0 : index
    %c0_31 = arith.constant 0 : index
    %50 = vector.load %arg4[%c1_29, %c0_30, %c0_31] : memref<12x32x32xbf16, #tpu.memory_space<vmem>>, vector<1x32x32xbf16>
    %51 = vector.shape_cast %50 : vector<1x32x32xbf16> to vector<32x32xbf16>
    %cst_32 = arith.constant dense<0.000000e+00> : vector<40x32xf32>
    %52 = tpu.matmul %49, %51, %cst_32 {dimension_numbers = #tpu.dot_dimension_numbers<[1], [0], [0], [1], [0, 0, 1, 1], [], []>} : vector<40x32xbf16>, vector<32x32xbf16>, vector<40x32xf32> -> vector<40x32xf32>
    %53 = arith.addf %48, %52 : vector<40x32xf32>
    %c6 = arith.constant 6 : index
    %c0_33 = arith.constant 0 : index
    %54 = vector.load %arg7[%c6, %c0_33] : memref<48x32xbf16, #tpu.memory_space<vmem>>, vector<40x32xbf16>
    %c2_34 = arith.constant 2 : index
    %c0_35 = arith.constant 0 : index
    %c0_36 = arith.constant 0 : index
    %55 = vector.load %arg4[%c2_34, %c0_35, %c0_36] : memref<12x32x32xbf16, #tpu.memory_space<vmem>>, vector<1x32x32xbf16>
    %56 = vector.shape_cast %55 : vector<1x32x32xbf16> to vector<32x32xbf16>
    %cst_37 = arith.constant dense<0.000000e+00> : vector<40x32xf32>
    %57 = tpu.matmul %54, %56, %cst_37 {dimension_numbers = #tpu.dot_dimension_numbers<[1], [0], [0], [1], [0, 0, 1, 1], [], []>} : vector<40x32xbf16>, vector<32x32xbf16>, vector<40x32xf32> -> vector<40x32xf32>
    %58 = arith.addf %53, %57 : vector<40x32xf32>
    %c1_38 = arith.constant 1 : index
    %c0_39 = arith.constant 0 : index
    %c0_40 = arith.constant 0 : index
    %59 = vector.load %arg5[%c1_38, %c0_39, %c0_40] : memref<5x1x32xf32, #tpu.memory_space<vmem>>, vector<1x1x32xf32>
    %60 = vector.shape_cast %59 : vector<1x1x32xf32> to vector<1x32xf32>
    %61 = vector.broadcast %60 : vector<1x32xf32> to vector<40x32xf32>
    %62 = arith.addf %58, %61 : vector<40x32xf32>
    %cst_41 = arith.constant 0.000000e+00 : f32
    %63 = vector.broadcast %cst_41 : f32 to vector<40x32xf32>
    %64 = arith.cmpf ogt, %62, %63 : vector<40x32xf32>
    %cst_42 = arith.constant 0.000000e+00 : f32
    %65 = vector.broadcast %cst_42 : f32 to vector<40x32xf32>
    %66 = arith.minimumf %62, %65 : vector<40x32xf32>
    %67 = math.exp %66 : vector<40x32xf32>
    %cst_43 = arith.constant 1.000000e+00 : f32
    %68 = vector.broadcast %cst_43 : f32 to vector<40x32xf32>
    %69 = arith.subf %67, %68 : vector<40x32xf32>
    %70 = arith.select %64, %62, %69 : vector<40x32xi1>, vector<40x32xf32>
    %71 = vector.extract_strided_slice %9 {offsets = [4, 0], sizes = [40, 1], strides = [1, 1]} : vector<48x1xi1> to vector<40x1xi1>
    %cst_44 = arith.constant 0.000000e+00 : f32
    %72 = vector.shape_cast %71 : vector<40x1xi1> to vector<40x1xi1>
    %73 = vector.broadcast %72 : vector<40x1xi1> to vector<40x32xi1>
    %74 = vector.broadcast %cst_44 : f32 to vector<40x32xf32>
    %75 = arith.select %73, %70, %74 : vector<40x32xi1>, vector<40x32xf32>
    %76 = arith.truncf %75 : vector<40x32xf32> to vector<40x32xbf16>
    %c4_45 = arith.constant 4 : index
    %c0_46 = arith.constant 0 : index
    %77 = vector.load %arg7[%c4_45, %c0_46] : memref<48x32xbf16, #tpu.memory_space<vmem>>, vector<40x32xbf16>
    tpu.vector_store %arg7[%c4_45, %c0_46], %76 {strides = array<i32>} : memref<48x32xbf16, #tpu.memory_space<vmem>>, vector<40x32xbf16>,
    %c4_47 = arith.constant 4 : index
    %c0_48 = arith.constant 0 : index
    %78 = vector.load %arg7[%c4_47, %c0_48] : memref<48x32xbf16, #tpu.memory_space<vmem>>, vector<34x32xbf16>
    %c3 = arith.constant 3 : index
    %c0_49 = arith.constant 0 : index
    %c0_50 = arith.constant 0 : index
    %79 = vector.load %arg4[%c3, %c0_49, %c0_50] : memref<12x32x32xbf16, #tpu.memory_space<vmem>>, vector<1x32x32xbf16>
    %80 = vector.shape_cast %79 : vector<1x32x32xbf16> to vector<32x32xbf16>
    %cst_51 = arith.constant dense<0.000000e+00> : vector<34x32xf32>
    %81 = tpu.matmul %78, %80, %cst_51 {dimension_numbers = #tpu.dot_dimension_numbers<[1], [0], [0], [1], [0, 0, 1, 1], [], []>} : vector<34x32xbf16>, vector<32x32xbf16>, vector<34x32xf32> -> vector<34x32xf32>
    %c7 = arith.constant 7 : index
    %c0_52 = arith.constant 0 : index
    %82 = vector.load %arg7[%c7, %c0_52] : memref<48x32xbf16, #tpu.memory_space<vmem>>, vector<34x32xbf16>
    %c4_53 = arith.constant 4 : index
    %c0_54 = arith.constant 0 : index
    %c0_55 = arith.constant 0 : index
    %83 = vector.load %arg4[%c4_53, %c0_54, %c0_55] : memref<12x32x32xbf16, #tpu.memory_space<vmem>>, vector<1x32x32xbf16>
    %84 = vector.shape_cast %83 : vector<1x32x32xbf16> to vector<32x32xbf16>
    %cst_56 = arith.constant dense<0.000000e+00> : vector<34x32xf32>
    %85 = tpu.matmul %82, %84, %cst_56 {dimension_numbers = #tpu.dot_dimension_numbers<[1], [0], [0], [1], [0, 0, 1, 1], [], []>} : vector<34x32xbf16>, vector<32x32xbf16>, vector<34x32xf32> -> vector<34x32xf32>
    %86 = arith.addf %81, %85 : vector<34x32xf32>
    %c10 = arith.constant 10 : index
    %c0_57 = arith.constant 0 : index
    %87 = vector.load %arg7[%c10, %c0_57] : memref<48x32xbf16, #tpu.memory_space<vmem>>, vector<34x32xbf16>
    %c5 = arith.constant 5 : index
    %c0_58 = arith.constant 0 : index
    %c0_59 = arith.constant 0 : index
    %88 = vector.load %arg4[%c5, %c0_58, %c0_59] : memref<12x32x32xbf16, #tpu.memory_space<vmem>>, vector<1x32x32xbf16>
    %89 = vector.shape_cast %88 : vector<1x32x32xbf16> to vector<32x32xbf16>
    %cst_60 = arith.constant dense<0.000000e+00> : vector<34x32xf32>
    %90 = tpu.matmul %87, %89, %cst_60 {dimension_numbers = #tpu.dot_dimension_numbers<[1], [0], [0], [1], [0, 0, 1, 1], [], []>} : vector<34x32xbf16>, vector<32x32xbf16>, vector<34x32xf32> -> vector<34x32xf32>
    %91 = arith.addf %86, %90 : vector<34x32xf32>
    %c2_61 = arith.constant 2 : index
    %c0_62 = arith.constant 0 : index
    %c0_63 = arith.constant 0 : index
    %92 = vector.load %arg5[%c2_61, %c0_62, %c0_63] : memref<5x1x32xf32, #tpu.memory_space<vmem>>, vector<1x1x32xf32>
    %93 = vector.shape_cast %92 : vector<1x1x32xf32> to vector<1x32xf32>
    %94 = vector.broadcast %93 : vector<1x32xf32> to vector<34x32xf32>
    %95 = arith.addf %91, %94 : vector<34x32xf32>
    %cst_64 = arith.constant 0.000000e+00 : f32
    %96 = vector.broadcast %cst_64 : f32 to vector<34x32xf32>
    %97 = arith.cmpf ogt, %95, %96 : vector<34x32xf32>
    %cst_65 = arith.constant 0.000000e+00 : f32
    %98 = vector.broadcast %cst_65 : f32 to vector<34x32xf32>
    %99 = arith.minimumf %95, %98 : vector<34x32xf32>
    %100 = math.exp %99 : vector<34x32xf32>
    %cst_66 = arith.constant 1.000000e+00 : f32
    %101 = vector.broadcast %cst_66 : f32 to vector<34x32xf32>
    %102 = arith.subf %100, %101 : vector<34x32xf32>
    %103 = arith.select %97, %95, %102 : vector<34x32xi1>, vector<34x32xf32>
    %104 = vector.extract_strided_slice %9 {offsets = [7, 0], sizes = [34, 1], strides = [1, 1]} : vector<48x1xi1> to vector<34x1xi1>
    %cst_67 = arith.constant 0.000000e+00 : f32
    %105 = vector.shape_cast %104 : vector<34x1xi1> to vector<34x1xi1>
    %106 = vector.broadcast %105 : vector<34x1xi1> to vector<34x32xi1>
    %107 = vector.broadcast %cst_67 : f32 to vector<34x32xf32>
    %108 = arith.select %106, %103, %107 : vector<34x32xi1>, vector<34x32xf32>
    %109 = arith.truncf %108 : vector<34x32xf32> to vector<34x32xbf16>
    %c7_68 = arith.constant 7 : index
    %c0_69 = arith.constant 0 : index
    %110 = vector.load %arg7[%c7_68, %c0_69] : memref<48x32xbf16, #tpu.memory_space<vmem>>, vector<34x32xbf16>
    tpu.vector_store %arg7[%c7_68, %c0_69], %109 {strides = array<i32>} : memref<48x32xbf16, #tpu.memory_space<vmem>>, vector<34x32xbf16>,
    %c7_70 = arith.constant 7 : index
    %c0_71 = arith.constant 0 : index
    %111 = vector.load %arg7[%c7_70, %c0_71] : memref<48x32xbf16, #tpu.memory_space<vmem>>, vector<26x32xbf16>
    %c6_72 = arith.constant 6 : index
    %c0_73 = arith.constant 0 : index
    %c0_74 = arith.constant 0 : index
    %112 = vector.load %arg4[%c6_72, %c0_73, %c0_74] : memref<12x32x32xbf16, #tpu.memory_space<vmem>>, vector<1x32x32xbf16>
    %113 = vector.shape_cast %112 : vector<1x32x32xbf16> to vector<32x32xbf16>
    %cst_75 = arith.constant dense<0.000000e+00> : vector<26x32xf32>
    %114 = tpu.matmul %111, %113, %cst_75 {dimension_numbers = #tpu.dot_dimension_numbers<[1], [0], [0], [1], [0, 0, 1, 1], [], []>} : vector<26x32xbf16>, vector<32x32xbf16>, vector<26x32xf32> -> vector<26x32xf32>
    %c11 = arith.constant 11 : index
    %c0_76 = arith.constant 0 : index
    %115 = vector.load %arg7[%c11, %c0_76] : memref<48x32xbf16, #tpu.memory_space<vmem>>, vector<26x32xbf16>
    %c7_77 = arith.constant 7 : index
    %c0_78 = arith.constant 0 : index
    %c0_79 = arith.constant 0 : index
    %116 = vector.load %arg4[%c7_77, %c0_78, %c0_79] : memref<12x32x32xbf16, #tpu.memory_space<vmem>>, vector<1x32x32xbf16>
    %117 = vector.shape_cast %116 : vector<1x32x32xbf16> to vector<32x32xbf16>
    %cst_80 = arith.constant dense<0.000000e+00> : vector<26x32xf32>
    %118 = tpu.matmul %115, %117, %cst_80 {dimension_numbers = #tpu.dot_dimension_numbers<[1], [0], [0], [1], [0, 0, 1, 1], [], []>} : vector<26x32xbf16>, vector<32x32xbf16>, vector<26x32xf32> -> vector<26x32xf32>
    %119 = arith.addf %114, %118 : vector<26x32xf32>
    %c15 = arith.constant 15 : index
    %c0_81 = arith.constant 0 : index
    %120 = vector.load %arg7[%c15, %c0_81] : memref<48x32xbf16, #tpu.memory_space<vmem>>, vector<26x32xbf16>
    %c8 = arith.constant 8 : index
    %c0_82 = arith.constant 0 : index
    %c0_83 = arith.constant 0 : index
    %121 = vector.load %arg4[%c8, %c0_82, %c0_83] : memref<12x32x32xbf16, #tpu.memory_space<vmem>>, vector<1x32x32xbf16>
    %122 = vector.shape_cast %121 : vector<1x32x32xbf16> to vector<32x32xbf16>
    %cst_84 = arith.constant dense<0.000000e+00> : vector<26x32xf32>
    %123 = tpu.matmul %120, %122, %cst_84 {dimension_numbers = #tpu.dot_dimension_numbers<[1], [0], [0], [1], [0, 0, 1, 1], [], []>} : vector<26x32xbf16>, vector<32x32xbf16>, vector<26x32xf32> -> vector<26x32xf32>
    %124 = arith.addf %119, %123 : vector<26x32xf32>
    %c3_85 = arith.constant 3 : index
    %c0_86 = arith.constant 0 : index
    %c0_87 = arith.constant 0 : index
    %125 = vector.load %arg5[%c3_85, %c0_86, %c0_87] : memref<5x1x32xf32, #tpu.memory_space<vmem>>, vector<1x1x32xf32>
    %126 = vector.shape_cast %125 : vector<1x1x32xf32> to vector<1x32xf32>
    %127 = vector.broadcast %126 : vector<1x32xf32> to vector<26x32xf32>
    %128 = arith.addf %124, %127 : vector<26x32xf32>
    %cst_88 = arith.constant 0.000000e+00 : f32
    %129 = vector.broadcast %cst_88 : f32 to vector<26x32xf32>
    %130 = arith.cmpf ogt, %128, %129 : vector<26x32xf32>
    %cst_89 = arith.constant 0.000000e+00 : f32
    %131 = vector.broadcast %cst_89 : f32 to vector<26x32xf32>
    %132 = arith.minimumf %128, %131 : vector<26x32xf32>
    %133 = math.exp %132 : vector<26x32xf32>
    %cst_90 = arith.constant 1.000000e+00 : f32
    %134 = vector.broadcast %cst_90 : f32 to vector<26x32xf32>
    %135 = arith.subf %133, %134 : vector<26x32xf32>
    %136 = arith.select %130, %128, %135 : vector<26x32xi1>, vector<26x32xf32>
    %137 = vector.extract_strided_slice %9 {offsets = [11, 0], sizes = [26, 1], strides = [1, 1]} : vector<48x1xi1> to vector<26x1xi1>
    %cst_91 = arith.constant 0.000000e+00 : f32
    %138 = vector.shape_cast %137 : vector<26x1xi1> to vector<26x1xi1>
    %139 = vector.broadcast %138 : vector<26x1xi1> to vector<26x32xi1>
    %140 = vector.broadcast %cst_91 : f32 to vector<26x32xf32>
    %141 = arith.select %139, %136, %140 : vector<26x32xi1>, vector<26x32xf32>
    %142 = arith.truncf %141 : vector<26x32xf32> to vector<26x32xbf16>
    %c11_92 = arith.constant 11 : index
    %c0_93 = arith.constant 0 : index
    %143 = vector.load %arg7[%c11_92, %c0_93] : memref<48x32xbf16, #tpu.memory_space<vmem>>, vector<26x32xbf16>
    tpu.vector_store %arg7[%c11_92, %c0_93], %142 {strides = array<i32>} : memref<48x32xbf16, #tpu.memory_space<vmem>>, vector<26x32xbf16>,
    %c11_94 = arith.constant 11 : index
    %c0_95 = arith.constant 0 : index
    %144 = vector.load %arg7[%c11_94, %c0_95] : memref<48x32xbf16, #tpu.memory_space<vmem>>, vector<16x32xbf16>
    %c9 = arith.constant 9 : index
    %c0_96 = arith.constant 0 : index
    %c0_97 = arith.constant 0 : index
    %145 = vector.load %arg4[%c9, %c0_96, %c0_97] : memref<12x32x32xbf16, #tpu.memory_space<vmem>>, vector<1x32x32xbf16>
    %146 = vector.shape_cast %145 : vector<1x32x32xbf16> to vector<32x32xbf16>
    %cst_98 = arith.constant dense<0.000000e+00> : vector<16x32xf32>
    %147 = tpu.matmul %144, %146, %cst_98 {dimension_numbers = #tpu.dot_dimension_numbers<[1], [0], [0], [1], [0, 0, 1, 1], [], []>} : vector<16x32xbf16>, vector<32x32xbf16>, vector<16x32xf32> -> vector<16x32xf32>
    %c16 = arith.constant 16 : index
    %c0_99 = arith.constant 0 : index
    %148 = vector.load %arg7[%c16, %c0_99] : memref<48x32xbf16, #tpu.memory_space<vmem>>, vector<16x32xbf16>
    %c10_100 = arith.constant 10 : index
    %c0_101 = arith.constant 0 : index
    %c0_102 = arith.constant 0 : index
    %149 = vector.load %arg4[%c10_100, %c0_101, %c0_102] : memref<12x32x32xbf16, #tpu.memory_space<vmem>>, vector<1x32x32xbf16>
    %150 = vector.shape_cast %149 : vector<1x32x32xbf16> to vector<32x32xbf16>
    %cst_103 = arith.constant dense<0.000000e+00> : vector<16x32xf32>
    %151 = tpu.matmul %148, %150, %cst_103 {dimension_numbers = #tpu.dot_dimension_numbers<[1], [0], [0], [1], [0, 0, 1, 1], [], []>} : vector<16x32xbf16>, vector<32x32xbf16>, vector<16x32xf32> -> vector<16x32xf32>
    %152 = arith.addf %147, %151 : vector<16x32xf32>
    %c21 = arith.constant 21 : index
    %c0_104 = arith.constant 0 : index
    %153 = vector.load %arg7[%c21, %c0_104] : memref<48x32xbf16, #tpu.memory_space<vmem>>, vector<16x32xbf16>
    %c11_105 = arith.constant 11 : index
    %c0_106 = arith.constant 0 : index
    %c0_107 = arith.constant 0 : index
    %154 = vector.load %arg4[%c11_105, %c0_106, %c0_107] : memref<12x32x32xbf16, #tpu.memory_space<vmem>>, vector<1x32x32xbf16>
    %155 = vector.shape_cast %154 : vector<1x32x32xbf16> to vector<32x32xbf16>
    %cst_108 = arith.constant dense<0.000000e+00> : vector<16x32xf32>
    %156 = tpu.matmul %153, %155, %cst_108 {dimension_numbers = #tpu.dot_dimension_numbers<[1], [0], [0], [1], [0, 0, 1, 1], [], []>} : vector<16x32xbf16>, vector<32x32xbf16>, vector<16x32xf32> -> vector<16x32xf32>
    %157 = arith.addf %152, %156 : vector<16x32xf32>
    %c4_109 = arith.constant 4 : index
    %c0_110 = arith.constant 0 : index
    %c0_111 = arith.constant 0 : index
    %158 = vector.load %arg5[%c4_109, %c0_110, %c0_111] : memref<5x1x32xf32, #tpu.memory_space<vmem>>, vector<1x1x32xf32>
    %159 = vector.shape_cast %158 : vector<1x1x32xf32> to vector<1x32xf32>
    %160 = vector.broadcast %159 : vector<1x32xf32> to vector<16x32xf32>
    %161 = arith.addf %157, %160 : vector<16x32xf32>
    %cst_112 = arith.constant 0.000000e+00 : f32
    %162 = vector.broadcast %cst_112 : f32 to vector<16x32xf32>
    %163 = arith.cmpf ogt, %161, %162 : vector<16x32xf32>
    %cst_113 = arith.constant 0.000000e+00 : f32
    %164 = vector.broadcast %cst_113 : f32 to vector<16x32xf32>
    %165 = arith.minimumf %161, %164 : vector<16x32xf32>
    %166 = math.exp %165 : vector<16x32xf32>
    %cst_114 = arith.constant 1.000000e+00 : f32
    %167 = vector.broadcast %cst_114 : f32 to vector<16x32xf32>
    %168 = arith.subf %166, %167 : vector<16x32xf32>
    %169 = arith.select %163, %161, %168 : vector<16x32xi1>, vector<16x32xf32>
    %c0_115 = arith.constant 0 : index
    %c0_116 = arith.constant 0 : index
    %c0_117 = arith.constant 0 : index
    %170 = vector.load %arg6[%c0_115, %c0_116, %c0_117] : memref<1x16x32xf32, #tpu.memory_space<vmem>>, vector<1x16x32xf32>
    %171 = vector.shape_cast %170 : vector<1x16x32xf32> to vector<16x32xf32>
    %172 = vector.shape_cast %169 : vector<16x32xf32> to vector<1x16x32xf32>
    tpu.vector_store %arg6[%c0_115, %c0_116, %c0_117], %172 {strides = array<i32>} : memref<1x16x32xf32, #tpu.memory_space<vmem>>, vector<1x16x32xf32>,
    return
  }
  func.func @transform_0(%arg0: i32, %arg1: i32) -> (i32, i32, i32) {
    %c1_i32 = arith.constant 1 : i32
    %0 = arith.muli %arg0, %c1_i32 : i32
    %1 = arith.addi %0, %arg1 : i32
    %c0_i32 = arith.constant 0 : i32
    %c0_i32_0 = arith.constant 0 : i32
    %c0_i32_1 = arith.constant 0 : i32
    return %1, %c0_i32, %c0_i32_0 : i32, i32, i32
  }
  func.func @transform_1(%arg0: i32, %arg1: i32) -> (i32, i32, i32) {
    %c0_i32 = arith.constant 0 : i32
    %c0_i32_0 = arith.constant 0 : i32
    %c0_i32_1 = arith.constant 0 : i32
    %c0_i32_2 = arith.constant 0 : i32
    return %c0_i32, %c0_i32_0, %c0_i32_1 : i32, i32, i32
  }
  func.func @transform_2(%arg0: i32, %arg1: i32) -> (i32, i32, i32) {
    %c0_i32 = arith.constant 0 : i32
    %c0_i32_0 = arith.constant 0 : i32
    %c0_i32_1 = arith.constant 0 : i32
    %c0_i32_2 = arith.constant 0 : i32
    return %c0_i32, %c0_i32_0, %c0_i32_1 : i32, i32, i32
  }
  func.func @transform_3(%arg0: i32, %arg1: i32) -> (i32, i32, i32) {
    %c0_i32 = arith.constant 0 : i32
    %c0_i32_0 = arith.constant 0 : i32
    %c0_i32_1 = arith.constant 0 : i32
    %c0_i32_2 = arith.constant 0 : i32
    return %c0_i32, %c0_i32_0, %c0_i32_1 : i32, i32, i32
  }
  func.func @transform_4(%arg0: i32, %arg1: i32) -> (i32, i32, i32) {
    %c0_i32 = arith.constant 0 : i32
    %c0_i32_0 = arith.constant 0 : i32
    return %arg0, %arg1, %c0_i32 : i32, i32, i32
  }
}

</mosaic_0001>

<llo_original>
// kernel: local_features_forward.1
$region0: #{local_features_forward.1}
  #allocation0 [shape = 'u32[]', space=smem, size = 0x4, offset = 0x4, fixed_abs, tag = 'smem constant byte address 0x4 - core index']
  #allocation1 [shape = 'u32[144,128]{1,0:T(1,128)}', space=vmem, size = 0x12000, scoped, tag = 'internal scratch']
  #allocation2 [shape = 'bf16[48,32]{1,0:T(16,128)(2,1)}', space=vmem, size = 0x3000, scoped, tag = 'scratch operand']
  %s0 = inlined_call_operand.vmem [shape: f32[2,48,4], index: 0, kind: input, shape index: {}]
  %s1 = inlined_call_operand.vmem [shape: f32[3,4,32], index: 1, kind: input, shape index: {}]
  %s2 = inlined_call_operand.vmem [shape: bf16[12,32,32], index: 2, kind: input, shape index: {}]
  %s3 = inlined_call_operand.vmem [shape: f32[5,1,32], index: 3, kind: input, shape index: {}]
  %s4 = inlined_call_operand.hbm [shape: f32[2,16,32], index: 4, kind: output, shape index: {}]
  %s5 = sld [smem:[#allocation0]]
  $region49: #{local_features_forward.1} parent=0
    _
  %s7 = ssub.s32 1, %s5
  %s8 = scalar_select 0, %s7, %s5
  $region1: #{local_features_forward.1} parent=0
    #allocation3 [shape = 'u8[16384]{0}', space=vmem, size = 0x4000, scoped, tag = 'output window, operand 0']
    #allocation4 [shape = 's32[2]{0}', space=sflag, size = 0x8, scoped, tag = 'scoped memory for local_features_forward.1']
    %9 = vsyncpa [#allocation4], 0
    %s10 = scalar_lea.sflag [#allocation4], 1
    %11 = vsyncpa %s10, 0
    loop: start=0, step=1, limit=4
    $region2: #{local_features_forward.1} parent=1 // loop_pre_header
      _
    $region3: #{local_features_forward.1} parent=1 // loop_header
      %s13 = sphi 0, %s17
      %p14 = scmp.ge.s32.totalorder %s13, 4
      %s20 = sphi 0, %s32
      %s21 = sphi 0, %s28
      %s22 = sphi 0, %s20
      %s23 = sphi 0, %s21
      %s24 = sphi 0, %s22
      %s25 = sphi 0, %s23
      %s37 = sphi 0, %s39
      %s40 = sphi 0, %s37
      %s41 = sphi 0, %s40
      %s57 = sphi 0, %s41
      %s61 = sphi 0, %s61
      %s63 = sphi 0, %s61
      %s64 = sphi 0, %s63
      %s78 = sphi 0, %s64
      %s82 = sphi 0, %s82
      %s84 = sphi 0, %s82
      %s85 = sphi 0, %s84
      %s99 = sphi 0, %s85
      %s103 = sphi 0, %s103
      %s105 = sphi 0, %s103
      %s106 = sphi 0, %s105
      %s120 = sphi 0, %s106
      %s128 = sphi 0, %s130
      %s131 = sphi 0, %s128
      %s132 = sphi 0, %s131
      %s148 = sphi 0, %s132
    $region4: #{local_features_forward.1} parent=1 // loop_header_branch
      %16 = sbr.rel (%p14) target = $region8
    $region5: #{local_features_forward.1} parent=1 // loop_body
      %s18 = ssub.s32 %s13, 1
      %s19 = ssub.s32 %s13, 2
      %s26 = sadd.s32 1, %s21
      %p27 = scmp.ge.s32.totalorder %s26, 1
      %s28 = scalar_select %p27, 0, %s26
      %s29 = sadd.s32 1, %s20
      %s30 = scalar_select %p27, %s29, %s20
      %p31 = scmp.ge.s32.totalorder %s30, 2
      %s32 = scalar_select %p31, 0, %s30
      %s33 = sadd.s32 %s20, %s21
      %s34 = sadd.s32 %s32, %s28
      %s35 = ssub.s32 %s33, %s34
      %p36 = scmp.eq.s32.totalorder %s35, 0
      %s38 = sadd.s32 %s37, 1
      %s39 = scalar_select %p36, %s37, %s38
      %p42 = pneg %p36
      %p43 = scmp.eq.s32.totalorder %s13, 1
      %p44 = por %p42, %p43
      %p45 = scmp.ne.s32.totalorder %s37, %s40
      %p46 = scmp.eq.s32.totalorder %s13, 0
      %p47 = por %p45, %p46
      %p48 = scmp.ne.s32.totalorder %s37, %s40
      %p49 = scmp.eq.s32.totalorder %s18, 1
      %p50 = por %p48, %p49
      %p51 = scmp.ne.s32.totalorder %s40, %s41
      %p52 = scmp.eq.s32.totalorder %s18, 0
      %p53 = por %p51, %p52
      %p54 = scmp.ne.s32.totalorder %s40, %s41
      %p55 = scmp.eq.s32.totalorder %s19, 1
      %p56 = por %p54, %p55
      %p58 = scmp.ne.s32.totalorder %s41, %s57
      %p59 = scmp.eq.s32.totalorder %s19, 0
      %p60 = por %p58, %p59
      %s62 = sadd.s32 %s61, 1
      %p65 = scmp.eq.s32.totalorder %s13, 1
      %p66 = scmp.ne.s32.totalorder %s61, %s63
      %p67 = scmp.eq.s32.totalorder %s13, 0
      %p68 = por %p66, %p67
      %p69 = scmp.ne.s32.totalorder %s61, %s63
      %p70 = scmp.eq.s32.totalorder %s18, 1
      %p71 = por %p69, %p70
      %p72 = scmp.ne.s32.totalorder %s63, %s64
      %p73 = scmp.eq.s32.totalorder %s18, 0
      %p74 = por %p72, %p73
      %p75 = scmp.ne.s32.totalorder %s63, %s64
      %p76 = scmp.eq.s32.totalorder %s19, 1
      %p77 = por %p75, %p76
      %p79 = scmp.ne.s32.totalorder %s64, %s78
      %p80 = scmp.eq.s32.totalorder %s19, 0
      %p81 = por %p79, %p80
      %s83 = sadd.s32 %s82, 1
      %p86 = scmp.eq.s32.totalorder %s13, 1
      %p87 = scmp.ne.s32.totalorder %s82, %s84
      %p88 = scmp.eq.s32.totalorder %s13, 0
      %p89 = por %p87, %p88
      %p90 = scmp.ne.s32.totalorder %s82, %s84
      %p91 = scmp.eq.s32.totalorder %s18, 1
      %p92 = por %p90, %p91
      %p93 = scmp.ne.s32.totalorder %s84, %s85
      %p94 = scmp.eq.s32.totalorder %s18, 0
      %p95 = por %p93, %p94
      %p96 = scmp.ne.s32.totalorder %s84, %s85
      %p97 = scmp.eq.s32.totalorder %s19, 1
      %p98 = por %p96, %p97
      %p100 = scmp.ne.s32.totalorder %s85, %s99
      %p101 = scmp.eq.s32.totalorder %s19, 0
      %p102 = por %p100, %p101
      %s104 = sadd.s32 %s103, 1
      %p107 = scmp.eq.s32.totalorder %s13, 1
      %p108 = scmp.ne.s32.totalorder %s103, %s105
      %p109 = scmp.eq.s32.totalorder %s13, 0
      %p110 = por %p108, %p109
      %p111 = scmp.ne.s32.totalorder %s103, %s105
      %p112 = scmp.eq.s32.totalorder %s18, 1
      %p113 = por %p111, %p112
      %p114 = scmp.ne.s32.totalorder %s105, %s106
      %p115 = scmp.eq.s32.totalorder %s18, 0
      %p116 = por %p114, %p115
      %p117 = scmp.ne.s32.totalorder %s105, %s106
      %p118 = scmp.eq.s32.totalorder %s19, 1
      %p119 = por %p117, %p118
      %p121 = scmp.ne.s32.totalorder %s106, %s120
      %p122 = scmp.eq.s32.totalorder %s19, 0
      %p123 = por %p121, %p122
      %s124 = ssub.s32 %s20, %s32
      %s125 = ssub.s32 %s21, %s28
      %s126 = sor.u32 %s124, %s125
      %p127 = scmp.eq.s32.totalorder %s126, 0
      %s129 = sadd.s32 %s128, 1
      %s130 = scalar_select %p127, %s128, %s129
      %p133 = pneg %p127
      %p134 = scmp.eq.s32.totalorder %s13, 1
      %p135 = por %p133, %p134
      %p136 = scmp.ne.s32.totalorder %s128, %s131
      %p137 = scmp.eq.s32.totalorder %s13, 0
      %p138 = por %p136, %p137
      %p139 = scmp.ne.s32.totalorder %s128, %s131
      %p140 = scmp.eq.s32.totalorder %s18, 1
      %p141 = por %p139, %p140
      %p142 = scmp.ne.s32.totalorder %s131, %s132
      %p143 = scmp.eq.s32.totalorder %s18, 0
      %p144 = por %p142, %p143
      %p145 = scmp.ne.s32.totalorder %s131, %s132
      %p146 = scmp.eq.s32.totalorder %s19, 1
      %p147 = por %p145, %p146
      %p149 = scmp.ne.s32.totalorder %s132, %s148
      %p150 = scmp.eq.s32.totalorder %s19, 0
      %p151 = por %p149, %p150
      %p152 = scmp.le.s32.totalorder 1, %s13
      %p153 = scmp.lt.s32.totalorder %s13, 3
      %p154 = pnand %p152, %p153
      %p155 = pneg %p154
      // Predicated region
      $region9: #{local_features_forward.1} parent=5 // pred_check
        _
      $region10: #{local_features_forward.1} parent=5 // pred_check_branch
        %157 = sbr.rel (%p154) target = $region12
      $region11: #{local_features_forward.1} parent=5 // pred_region
        %s158 = ssub.s32 %s13, 1
        // Predicated region
        $region13: #{local_features_forward.1} parent=11 // pred_check
          %p159 = pneg %p74
        $region14: #{local_features_forward.1} parent=11 // pred_check_branch
          %161 = sbr.rel (%p159) target = $region16
        $region15: #{local_features_forward.1} parent=11 // pred_region
          _
        $region16: #{local_features_forward.1} parent=11 // pred_fallthru
          _
        // Predicated region
        $region17: #{local_features_forward.1} parent=11 // pred_check
          %p162 = pneg %p95
        $region18: #{local_features_forward.1} parent=11 // pred_check_branch
          %164 = sbr.rel (%p162) target = $region20
        $region19: #{local_features_forward.1} parent=11 // pred_region
          _
        $region20: #{local_features_forward.1} parent=11 // pred_fallthru
          _
        // Predicated region
        $region21: #{local_features_forward.1} parent=11 // pred_check
          %p165 = pneg %p116
        $region22: #{local_features_forward.1} parent=11 // pred_check_branch
          %167 = sbr.rel (%p165) target = $region24
        $region23: #{local_features_forward.1} parent=11 // pred_region
          _
        $region24: #{local_features_forward.1} parent=11 // pred_fallthru
          _
      $region12: #{local_features_forward.1} parent=5 // pred_fallthru
        _
      %p168 = scmp.lt.s32.totalorder %s13, 2
      // Predicated region
      $region25: #{local_features_forward.1} parent=5 // pred_check
        %p169 = pneg %p168
      $region26: #{local_features_forward.1} parent=5 // pred_check_branch
        %171 = sbr.rel (%p169) target = $region28
      $region27: #{local_features_forward.1} parent=5 // pred_region
        // Predicated region
        $region29: #{local_features_forward.1} parent=27 // pred_check
          %p172 = pneg %p47
        $region30: #{local_features_forward.1} parent=27 // pred_check_branch
          %174 = sbr.rel (%p172) target = $region32
        $region31: #{local_features_forward.1} parent=27 // pred_region
          %s175 = sadd.s32 %s20, %s21
          %p176 = scmp.lt.s32.totalorder %s175, 1
          %s177 = scalar_select %p176, %s175, 1
          %s178 = smul.addr %s177, 6
          %s179 = smul.addr %s178, 8
          %s180 = scalar_lea.vmem %s0, %s179
          %s181 = sadd.s32 %s20, %s21
        $region32: #{local_features_forward.1} parent=27 // pred_fallthru
          _
      $region28: #{local_features_forward.1} parent=5 // pred_fallthru
        _
      %p182 = scmp.le.s32.totalorder 1, %s13
      %p183 = scmp.lt.s32.totalorder %s13, 3
      %p184 = pnand %p182, %p183
      %p185 = pneg %p184
      // Predicated region
      $region33: #{local_features_forward.1} parent=5 // pred_check
        _
      $region34: #{local_features_forward.1} parent=5 // pred_check_branch
        %187 = sbr.rel (%p184) target = $region36
      $region35: #{local_features_forward.1} parent=5 // pred_region
        %s188 = ssub.s32 %s13, 1
        %s189 = sadd.s32 %s22, %s23
        %p190 = scmp.lt.s32.totalorder %s189, 1
        %s191 = scalar_select %p190, %s189, 1
        %s192 = smul.addr %s191, 6
        %s193 = smul.addr %s192, 8
        %s194 = scalar_lea.vmem %s0, %s193
        %p195 = pneg %p53
        %p196 = pneg %p50
        %p197 = pneg %p74
        %p198 = pneg %p71
        %p199 = pneg %p95
        %p200 = pneg %p92
        %p201 = pneg %p116
        %p202 = pneg %p113
        %p203 = pneg %p144
        %p204 = pneg %p141
        %s205 = sand.u32 %s131, 1
        %s206 = scalar_lea.sflag [#allocation4], %s205
        %s207 = sand.u32 %s131, 1
        %s208 = smul.addr %s207, 16
        %s209 = scalar_lea.vmem [#allocation3], %s208
        %s210 = sadd.s32 %s22, %s23
        %p211 = scmp.lt.s32.totalorder %s210, 1
        %s212 = scalar_select %p211, %s210, 1
        %s213 = smul.addr %s212, 6
        %s214 = smul.addr %s213, 8
        %s215 = scalar_lea.vmem %s0, %s214
        %s216 = sadd.s32 %s22, %s23
        %s217 = smul.u32 2, %s23
        %s219 = smul.u32 %s23, 16
        %s220 = ssub.s32 %s219, 16
        %v221 = vlaneseq
        %v222 = vshrl.u32 %v221, 7
        %v223 = vadd.s32 %v222, 8
        %v224 = vadd.s32 %v222, 16
        %v225 = vadd.s32 %v222, 24
        %v226 = vadd.s32 %v222, 32
        %v227 = vadd.s32 %v222, 40
        %v228 = vstv %s220
        %v229 = vadd.s32 %v222, %v228
        %v230 = vadd.s32 %v223, %v228
        %v231 = vadd.s32 %v224, %v228
        %v232 = vadd.s32 %v225, %v228
        %v233 = vadd.s32 %v226, %v228
        %v234 = vadd.s32 %v227, %v228
        %vm235 = vcmp.ge.s32.totalorder %v229, 0
        %vm236 = vcmp.ge.s32.totalorder %v230, 0
        %vm237 = vcmp.ge.s32.totalorder %v231, 0
        %vm238 = vcmp.ge.s32.totalorder %v232, 0
        %vm239 = vcmp.ge.s32.totalorder %v233, 0
        %vm240 = vcmp.ge.s32.totalorder %v234, 0
        %vm241 = vcmp.lt.s32.totalorder %v229, 16
        %vm242 = vcmp.lt.s32.totalorder %v230, 16
        %vm243 = vcmp.lt.s32.totalorder %v231, 16
        %vm244 = vcmp.lt.s32.totalorder %v232, 16
        %vm245 = vcmp.lt.s32.totalorder %v233, 16
        %vm246 = vcmp.lt.s32.totalorder %v234, 16
        %vm247 = vmand %vm235, %vm241
        %vm248 = vmand %vm236, %vm242
        %vm249 = vmand %vm237, %vm243
        %vm250 = vmand %vm238, %vm244
        %vm251 = vmand %vm239, %vm245
        %vm252 = vmand %vm240, %vm246
        %v253 = vld [vmem:[%s215] sm:$0xff]
        %v254 = vld [vmem:[%s215 + $0x8] sm:$0xff]
        %v255 = vld [vmem:[%s215 + $0x10] sm:$0xff]
        %v256 = vld [vmem:[%s215 + $0x18] sm:$0xff]
        %v257 = vld [vmem:[%s215 + $0x20] sm:$0xff]
        %v258 = vld [vmem:[%s215 + $0x28] sm:$0xff]
        %v259 = vld [vmem:[%s1] sm:$0xf]
        %s260 = scalar_lea.vmem %s1, 4
        %v261 = vld [vmem:[%s260] sm:$0xf]
        %vm268 = vcmask 1045504
        %v269 = vrot.slane %v253, 2
        %v270 = vrot.slane %v254, 2
        %v271 = vsel %vm268, %v269, %v270
        %v272 = vrot.slane %v255, 2
        %v273 = vsel %vm268, %v270, %v272
        %v274 = vrot.slane %v256, 2
        %v275 = vsel %vm268, %v272, %v274
        %v276 = vrot.slane %v257, 2
        %v277 = vsel %vm268, %v274, %v276
        %v278 = vrot.slane %v258, 2
        %v279 = vsel %vm268, %v276, %v278
        %vm280 = vcmask 31744
        %v281 = vsel %vm280, %v271, 0
        %v283 = vsel %vm280, %v273, 0
        %v285 = vsel %vm280, %v275, 0
        %v287 = vsel %vm280, %v277, 0
        %v289 = vsel %vm280, %v279, 0
        %v291 = vsel %vm280, %v278, 0
        %vm293 = vcmask 1043456
        %v295 = vsel %vm293, %v261, 0
        %297 = vmatprep.subr.mxu0 0.0
        %298 = vmatpush1.msra.mxu0 %v295
        %299 = vmatprep.subr.mxu0 0.0
        %300 = vmatpush1.msra.mxu0 0.0
        %301 = vmatprep.subr.mxu0 0.0
        %302 = vmatpush1.msra.mxu0 0.0
        %303 = vmatprep.subr.mxu0 0.0
        %304 = vmatpush1.msra.mxu0 0.0
        %305 = vmatprep.subr.mxu0 0.0
        %306 = vmatpush1.msra.mxu0 0.0
        %307 = vmatprep.subr.mxu0 0.0
        %308 = vmatpush1.msra.mxu0 0.0
        %309 = vmatprep.subr.mxu0 0.0
        %310 = vmatpush1.msra.mxu0 0.0
        %311 = vmatprep.subr.mxu0 0.0
        %312 = vmatpush1.msra.mxu0 0.0
        %313 = vmatprep.subr.mxu0 0.0
        %314 = vmatpush1.msra.mxu0 0.0
        %315 = vmatprep.subr.mxu0 0.0
        %316 = vmatpush1.msra.mxu0 0.0
        %317 = vmatprep.subr.mxu0 0.0
        %318 = vmatpush1.msra.mxu0 0.0
        %319 = vmatprep.subr.mxu0 0.0
        %320 = vmatpush1.msra.mxu0 0.0
        %321 = vmatprep.subr.mxu0 0.0
        %322 = vmatpush1.msra.mxu0 0.0
        %323 = vmatprep.subr.mxu0 0.0
        %324 = vmatpush1.msra.mxu0 0.0
        %325 = vmatprep.subr.mxu0 0.0
        %326 = vmatpush1.msra.mxu0 0.0
        %327 = vmatprep.subr.mxu0 0.0
        %328 = vmatpush1.msra.mxu0 0.0
        %329 = vmatprep.subr.mxu0 0.0
        %330 = vmatpush1.msra.mxu0 0.0
        %331 = vmatprep.subr.mxu0 0.0
        %332 = vmatpush1.msra.mxu0 0.0
        %333 = vmatprep.subr.mxu0 0.0
        %334 = vmatpush1.msra.mxu0 0.0
        %335 = vmatprep.subr.mxu0 0.0
        %336 = vmatpush1.msra.mxu0 0.0
        %337 = vmatprep.subr.mxu0 0.0
        %338 = vmatpush1.msra.mxu0 0.0
        %339 = vmatprep.subr.mxu0 0.0
        %340 = vmatpush1.msra.mxu0 0.0
        %341 = vmatprep.subr.mxu0 0.0
        %342 = vmatpush1.msra.mxu0 0.0
        %343 = vmatprep.subr.mxu0 0.0
        %344 = vmatpush1.msra.mxu0 0.0
        %345 = vmatprep.subr.mxu0 0.0
        %346 = vmatpush1.msra.mxu0 0.0
        %347 = vmatprep.subr.mxu0 0.0
        %348 = vmatpush1.msra.mxu0 0.0
        %349 = vmatprep.subr.mxu0 0.0
        %350 = vmatpush1.msra.mxu0 0.0
        %351 = vmatprep.subr.mxu0 0.0
        %352 = vmatpush1.msra.mxu0 0.0
        %353 = vmatprep.subr.mxu0 0.0
        %354 = vmatpush1.msra.mxu0 0.0
        %355 = vmatprep.subr.mxu0 0.0
        %356 = vmatpush1.msra.mxu0 0.0
        %357 = vmatprep.subr.mxu0 0.0
        %358 = vmatpush1.msra.mxu0 0.0
        %359 = vmatprep.subr.mxu0 0.0
        %360 = vmatpush1.msra.mxu0 0.0
        %361 = vmatprep.mubr.f32.mxu0 0.0
        %362 = vmatmul.mubr.f32.gmra.mrb[0].mxu0 %v281
        %v363 = vpop.f32.mrb[0].mxu0
        %v364 = vadd.f32 0.0, %v363
        %v365 = vpop.f32.mrb[0].mxu0
        %366 = vmatprep.mubr.f32.mxu0 0.0
        %367 = vmatmul.mubr.f32.gmra.mrb[0].mxu0 %v283
        %v368 = vpop.f32.mrb[0].mxu0
        %v369 = vadd.f32 0.0, %v368
        %v370 = vpop.f32.mrb[0].mxu0
        %371 = vmatprep.mubr.f32.mxu0 0.0
        %372 = vmatmul.mubr.f32.gmra.mrb[0].mxu0 %v285
        %v373 = vpop.f32.mrb[0].mxu0
        %v374 = vadd.f32 0.0, %v373
        %v375 = vpop.f32.mrb[0].mxu0
        %376 = vmatprep.mubr.f32.mxu0 0.0
        %377 = vmatmul.mubr.f32.gmra.mrb[0].mxu0 %v287
        %v378 = vpop.f32.mrb[0].mxu0
        %v379 = vadd.f32 0.0, %v378
        %v380 = vpop.f32.mrb[0].mxu0
        %381 = vmatprep.mubr.f32.mxu0 0.0
        %382 = vmatmul.mubr.f32.gmra.mrb[0].mxu0 %v289
        %v383 = vpop.f32.mrb[0].mxu0
        %v384 = vadd.f32 0.0, %v383
        %v385 = vpop.f32.mrb[0].mxu0
        %386 = vmatprep.mubr.f32.mxu0 0.0
        %387 = vmatmul.mubr.f32.gmra.mrb[0].mxu0 %v291
        %v388 = vpop.f32.mrb[0].mxu0
        %v389 = vadd.f32 0.0, %v388
        %v390 = vpop.f32.mrb[0].mxu0
        %391 = vdwg.mxu0
        %vm392 = vcmask 1046528
        %v393 = vrot.slane %v253, 1
        %v394 = vrot.slane %v254, 1
        %v395 = vsel %vm392, %v393, %v394
        %v396 = vrot.slane %v255, 1
        %v397 = vsel %vm392, %v394, %v396
        %v398 = vrot.slane %v256, 1
        %v399 = vsel %vm392, %v396, %v398
        %v400 = vrot.slane %v257, 1
        %v401 = vsel %vm392, %v398, %v400
        %v402 = vrot.slane %v258, 1
        %v403 = vsel %vm392, %v400, %v402
        %v404 = vsel %vm280, %v395, 0
        %v406 = vsel %vm280, %v397, 0
        %v408 = vsel %vm280, %v399, 0
        %v410 = vsel %vm280, %v401, 0
        %v412 = vsel %vm280, %v403, 0
        %v414 = vsel %vm280, %v402, 0
        %v417 = vsel %vm293, %v259, 0
        %419 = vmatprep.subr.mxu0 0.0
        %420 = vmatpush1.msra.mxu0 %v417
        %421 = vmatprep.subr.mxu0 0.0
        %422 = vmatpush1.msra.mxu0 0.0
        %423 = vmatprep.subr.mxu0 0.0
        %424 = vmatpush1.msra.mxu0 0.0
        %425 = vmatprep.subr.mxu0 0.0
        %426 = vmatpush1.msra.mxu0 0.0
        %427 = vmatprep.subr.mxu0 0.0
        %428 = vmatpush1.msra.mxu0 0.0
        %429 = vmatprep.subr.mxu0 0.0
        %430 = vmatpush1.msra.mxu0 0.0
        %431 = vmatprep.subr.mxu0 0.0
        %432 = vmatpush1.msra.mxu0 0.0
        %433 = vmatprep.subr.mxu0 0.0
        %434 = vmatpush1.msra.mxu0 0.0
        %435 = vmatprep.subr.mxu0 0.0
        %436 = vmatpush1.msra.mxu0 0.0
        %437 = vmatprep.subr.mxu0 0.0
        %438 = vmatpush1.msra.mxu0 0.0
        %439 = vmatprep.subr.mxu0 0.0
        %440 = vmatpush1.msra.mxu0 0.0
        %441 = vmatprep.subr.mxu0 0.0
        %442 = vmatpush1.msra.mxu0 0.0
        %443 = vmatprep.subr.mxu0 0.0
        %444 = vmatpush1.msra.mxu0 0.0
        %445 = vmatprep.subr.mxu0 0.0
        %446 = vmatpush1.msra.mxu0 0.0
        %447 = vmatprep.subr.mxu0 0.0
        %448 = vmatpush1.msra.mxu0 0.0
        %449 = vmatprep.subr.mxu0 0.0
        %450 = vmatpush1.msra.mxu0 0.0
        %451 = vmatprep.subr.mxu0 0.0
        %452 = vmatpush1.msra.mxu0 0.0
        %453 = vmatprep.subr.mxu0 0.0
        %454 = vmatpush1.msra.mxu0 0.0
        %455 = vmatprep.subr.mxu0 0.0
        %456 = vmatpush1.msra.mxu0 0.0
        %457 = vmatprep.subr.mxu0 0.0
        %458 = vmatpush1.msra.mxu0 0.0
        %459 = vmatprep.subr.mxu0 0.0
        %460 = vmatpush1.msra.mxu0 0.0
        %461 = vmatprep.subr.mxu0 0.0
        %462 = vmatpush1.msra.mxu0 0.0
        %463 = vmatprep.subr.mxu0 0.0
        %464 = vmatpush1.msra.mxu0 0.0
        %465 = vmatprep.subr.mxu0 0.0
        %466 = vmatpush1.msra.mxu0 0.0
        %467 = vmatprep.subr.mxu0 0.0
        %468 = vmatpush1.msra.mxu0 0.0
        %469 = vmatprep.subr.mxu0 0.0
        %470 = vmatpush1.msra.mxu0 0.0
        %471 = vmatprep.subr.mxu0 0.0
        %472 = vmatpush1.msra.mxu0 0.0
        %473 = vmatprep.subr.mxu0 0.0
        %474 = vmatpush1.msra.mxu0 0.0
        %475 = vmatprep.subr.mxu0 0.0
        %476 = vmatpush1.msra.mxu0 0.0
        %477 = vmatprep.subr.mxu0 0.0
        %478 = vmatpush1.msra.mxu0 0.0
        %479 = vmatprep.subr.mxu0 0.0
        %480 = vmatpush1.msra.mxu0 0.0
        %481 = vmatprep.subr.mxu0 0.0
        %482 = vmatpush1.msra.mxu0 0.0
        %483 = vmatprep.mubr.f32.mxu0 0.0
        %484 = vmatmul.mubr.f32.gmra.mrb[0].mxu0 %v404
        %v485 = vpop.f32.mrb[0].mxu0
        %v486 = vadd.f32 %v364, %v485
        %v487 = vpop.f32.mrb[0].mxu0
        %488 = vmatprep.mubr.f32.mxu0 0.0
        %489 = vmatmul.mubr.f32.gmra.mrb[0].mxu0 %v406
        %v490 = vpop.f32.mrb[0].mxu0
        %v491 = vadd.f32 %v369, %v490
        %v492 = vpop.f32.mrb[0].mxu0
        %493 = vmatprep.mubr.f32.mxu0 0.0
        %494 = vmatmul.mubr.f32.gmra.mrb[0].mxu0 %v408
        %v495 = vpop.f32.mrb[0].mxu0
        %v496 = vadd.f32 %v374, %v495
        %v497 = vpop.f32.mrb[0].mxu0
        %498 = vmatprep.mubr.f32.mxu0 0.0
        %499 = vmatmul.mubr.f32.gmra.mrb[0].mxu0 %v410
        %v500 = vpop.f32.mrb[0].mxu0
        %v501 = vadd.f32 %v379, %v500
        %v502 = vpop.f32.mrb[0].mxu0
        %503 = vmatprep.mubr.f32.mxu0 0.0
        %504 = vmatmul.mubr.f32.gmra.mrb[0].mxu0 %v412
        %v505 = vpop.f32.mrb[0].mxu0
        %v506 = vadd.f32 %v384, %v505
        %v507 = vpop.f32.mrb[0].mxu0
        %508 = vmatprep.mubr.f32.mxu0 0.0
        %509 = vmatmul.mubr.f32.gmra.mrb[0].mxu0 %v414
        %v510 = vpop.f32.mrb[0].mxu0
        %v511 = vadd.f32 %v389, %v510
        %v512 = vpop.f32.mrb[0].mxu0
        %513 = vdwg.mxu0
        %s514 = scalar_lea.vmem %s1, 8
        %v515 = vld [vmem:[%s514] sm:$0xf]
        %vm516 = vcmask 1044480
        %v517 = vrot.slane %v253, 3
        %v518 = vrot.slane %v254, 3
        %v519 = vsel %vm516, %v517, %v518
        %v520 = vrot.slane %v255, 3
        %v521 = vsel %vm516, %v518, %v520
        %v522 = vrot.slane %v256, 3
        %v523 = vsel %vm516, %v520, %v522
        %v524 = vrot.slane %v257, 3
        %v525 = vsel %vm516, %v522, %v524
        %v526 = vrot.slane %v258, 3
        %v527 = vsel %vm516, %v524, %v526
        %v528 = vsel %vm280, %v519, 0
        %v530 = vsel %vm280, %v521, 0
        %v532 = vsel %vm280, %v523, 0
        %v534 = vsel %vm280, %v525, 0
        %v536 = vsel %vm280, %v527, 0
        %v538 = vsel %vm280, %v526, 0
        %v541 = vsel %vm293, %v515, 0
        %543 = vmatprep.subr.mxu0 0.0
        %544 = vmatpush1.msra.mxu0 %v541
        %545 = vmatprep.subr.mxu0 0.0
        %546 = vmatpush1.msra.mxu0 0.0
        %547 = vmatprep.subr.mxu0 0.0
        %548 = vmatpush1.msra.mxu0 0.0
        %549 = vmatprep.subr.mxu0 0.0
        %550 = vmatpush1.msra.mxu0 0.0
        %551 = vmatprep.subr.mxu0 0.0
        %552 = vmatpush1.msra.mxu0 0.0
        %553 = vmatprep.subr.mxu0 0.0
        %554 = vmatpush1.msra.mxu0 0.0
        %555 = vmatprep.subr.mxu0 0.0
        %556 = vmatpush1.msra.mxu0 0.0
        %557 = vmatprep.subr.mxu0 0.0
        %558 = vmatpush1.msra.mxu0 0.0
        %559 = vmatprep.subr.mxu0 0.0
        %560 = vmatpush1.msra.mxu0 0.0
        %561 = vmatprep.subr.mxu0 0.0
        %562 = vmatpush1.msra.mxu0 0.0
        %563 = vmatprep.subr.mxu0 0.0
        %564 = vmatpush1.msra.mxu0 0.0
        %565 = vmatprep.subr.mxu0 0.0
        %566 = vmatpush1.msra.mxu0 0.0
        %567 = vmatprep.subr.mxu0 0.0
        %568 = vmatpush1.msra.mxu0 0.0
        %569 = vmatprep.subr.mxu0 0.0
        %570 = vmatpush1.msra.mxu0 0.0
        %571 = vmatprep.subr.mxu0 0.0
        %572 = vmatpush1.msra.mxu0 0.0
        %573 = vmatprep.subr.mxu0 0.0
        %574 = vmatpush1.msra.mxu0 0.0
        %575 = vmatprep.subr.mxu0 0.0
        %576 = vmatpush1.msra.mxu0 0.0
        %577 = vmatprep.subr.mxu0 0.0
        %578 = vmatpush1.msra.mxu0 0.0
        %579 = vmatprep.subr.mxu0 0.0
        %580 = vmatpush1.msra.mxu0 0.0
        %581 = vmatprep.subr.mxu0 0.0
        %582 = vmatpush1.msra.mxu0 0.0
        %583 = vmatprep.subr.mxu0 0.0
        %584 = vmatpush1.msra.mxu0 0.0
        %585 = vmatprep.subr.mxu0 0.0
        %586 = vmatpush1.msra.mxu0 0.0
        %587 = vmatprep.subr.mxu0 0.0
        %588 = vmatpush1.msra.mxu0 0.0
        %589 = vmatprep.subr.mxu0 0.0
        %590 = vmatpush1.msra.mxu0 0.0
        %591 = vmatprep.subr.mxu0 0.0
        %592 = vmatpush1.msra.mxu0 0.0
        %593 = vmatprep.subr.mxu0 0.0
        %594 = vmatpush1.msra.mxu0 0.0
        %595 = vmatprep.subr.mxu0 0.0
        %596 = vmatpush1.msra.mxu0 0.0
        %597 = vmatprep.subr.mxu0 0.0
        %598 = vmatpush1.msra.mxu0 0.0
        %599 = vmatprep.subr.mxu0 0.0
        %600 = vmatpush1.msra.mxu0 0.0
        %601 = vmatprep.subr.mxu0 0.0
        %602 = vmatpush1.msra.mxu0 0.0
        %603 = vmatprep.subr.mxu0 0.0
        %604 = vmatpush1.msra.mxu0 0.0
        %605 = vmatprep.subr.mxu0 0.0
        %606 = vmatpush1.msra.mxu0 0.0
        %607 = vmatprep.mubr.f32.mxu0 0.0
        %608 = vmatmul.mubr.f32.gmra.mrb[0].mxu0 %v528
        %v609 = vpop.f32.mrb[0].mxu0
        %v610 = vadd.f32 0.0, %v609
        %v611 = vpop.f32.mrb[0].mxu0
        %612 = vmatprep.mubr.f32.mxu0 0.0
        %613 = vmatmul.mubr.f32.gmra.mrb[0].mxu0 %v530
        %v614 = vpop.f32.mrb[0].mxu0
        %v615 = vadd.f32 0.0, %v614
        %v616 = vpop.f32.mrb[0].mxu0
        %617 = vmatprep.mubr.f32.mxu0 0.0
        %618 = vmatmul.mubr.f32.gmra.mrb[0].mxu0 %v532
        %v619 = vpop.f32.mrb[0].mxu0
        %v620 = vadd.f32 0.0, %v619
        %v621 = vpop.f32.mrb[0].mxu0
        %622 = vmatprep.mubr.f32.mxu0 0.0
        %623 = vmatmul.mubr.f32.gmra.mrb[0].mxu0 %v534
        %v624 = vpop.f32.mrb[0].mxu0
        %v625 = vadd.f32 0.0, %v624
        %v626 = vpop.f32.mrb[0].mxu0
        %627 = vmatprep.mubr.f32.mxu0 0.0
        %628 = vmatmul.mubr.f32.gmra.mrb[0].mxu0 %v536
        %v629 = vpop.f32.mrb[0].mxu0
        %v630 = vadd.f32 0.0, %v629
        %v631 = vpop.f32.mrb[0].mxu0
        %632 = vmatprep.mubr.f32.mxu0 0.0
        %633 = vmatmul.mubr.f32.gmra.mrb[0].mxu0 %v538
        %v634 = vpop.f32.mrb[0].mxu0
        %v635 = vadd.f32 0.0, %v634
        %v636 = vpop.f32.mrb[0].mxu0
        %637 = vdwg.mxu0
        %v638 = vadd.f32 %v486, %v610
        %v639 = vadd.f32 %v491, %v615
        %v640 = vadd.f32 %v496, %v620
        %v641 = vadd.f32 %v501, %v625
        %v642 = vadd.f32 %v506, %v630
        %v643 = vadd.f32 %v511, %v635
        %v644 = vld [vmem:[%s3] sm:$0x1]
        %v646 = vlaneseq
        %v647 = vshrl.u32 %v646, 7
        %v648 = vsub.s32 0, %v647
        %v649 = vrot.slane %v644, %v648
        %v651 = vadd.f32 %v638, %v649
        %v652 = vadd.f32 %v639, %v649
        %v653 = vadd.f32 %v640, %v649
        %v654 = vadd.f32 %v641, %v649
        %v655 = vadd.f32 %v642, %v649
        %v656 = vadd.f32 %v643, %v649
        %vm657 = vcmp.gt.f32.partialorder %v651, 0.0
        %vm658 = vcmp.gt.f32.partialorder %v652, 0.0
        %vm659 = vcmp.gt.f32.partialorder %v653, 0.0
        %vm660 = vcmp.gt.f32.partialorder %v654, 0.0
        %vm661 = vcmp.gt.f32.partialorder %v655, 0.0
        %vm662 = vcmp.gt.f32.partialorder %v656, 0.0
        %v663 = vmin.f32 %v651, 0.0
        %v664 = vmin.f32 %v652, 0.0
        %v665 = vmin.f32 %v653, 0.0
        %v666 = vmin.f32 %v654, 0.0
        %v667 = vmin.f32 %v655, 0.0
        %v668 = vmin.f32 %v656, 0.0
        %v669 = vmul.f32 %v663, 1.442695
        %v670 = vpow.pop %v669
        %v671 = vmul.f32 %v664, 1.442695
        %v672 = vpow.pop %v671
        %v673 = vmul.f32 %v665, 1.442695
        %v674 = vpow.pop %v673
        %v675 = vmul.f32 %v666, 1.442695
        %v676 = vpow.pop %v675
        %v677 = vmul.f32 %v667, 1.442695
        %v678 = vpow.pop %v677
        %v679 = vmul.f32 %v668, 1.442695
        %v680 = vpow.pop %v679
        %v681 = vsub.f32 %v670, 1.0
        %v682 = vsub.f32 %v672, 1.0
        %v683 = vsub.f32 %v674, 1.0
        %v684 = vsub.f32 %v676, 1.0
        %v685 = vsub.f32 %v678, 1.0
        %v686 = vsub.f32 %v680, 1.0
        %v687 = vsel %vm657, %v651, %v681
        %v688 = vsel %vm658, %v652, %v682
        %v689 = vsel %vm659, %v653, %v683
        %v690 = vsel %vm660, %v654, %v684
        %v691 = vsel %vm661, %v655, %v685
        %v692 = vsel %vm662, %v656, %v686
        %v693 = vsel %vm247, 1, 0
        %v694 = vsel %vm248, 1, 0
        %v695 = vsel %vm249, 1, 0
        %v696 = vsel %vm250, 1, 0
        %v697 = vsel %vm251, 1, 0
        %v698 = vsel %vm252, 1, 0
        %vm699 = vcmp.eq.s32.totalorder %v693, 1
        %vm700 = vcmp.eq.s32.totalorder %v694, 1
        %vm701 = vcmp.eq.s32.totalorder %v695, 1
        %vm702 = vcmp.eq.s32.totalorder %v696, 1
        %vm703 = vcmp.eq.s32.totalorder %v697, 1
        %vm704 = vcmp.eq.s32.totalorder %v698, 1
        %vm711 = vcmask 1041408
        %v712 = vrot.slane %v687, 6
        %v713 = vrot.slane %v688, 6
        %v714 = vsel %vm711, %v712, %v713
        %v715 = vrot.slane %v689, 6
        %v716 = vsel %vm711, %v713, %v715
        %v717 = vrot.slane %v690, 6
        %v718 = vsel %vm711, %v715, %v717
        %v719 = vrot.slane %v691, 6
        %v720 = vsel %vm711, %v717, %v719
        %v721 = vrot.slane %v692, 6
        %v722 = vsel %vm711, %v719, %v721
        %v729 = vsel %vm699, %v712, 0.0
        %v730 = vsel %vm700, %v714, 0.0
        %v731 = vsel %vm701, %v716, 0.0
        %v732 = vsel %vm702, %v718, 0.0
        %v733 = vsel %vm703, %v720, 0.0
        %v734 = vsel %vm704, %v722, 0.0
        %v735 = vpack.c.bf16 %v730, %v729
        %v736 = vpack.c.bf16 %v732, %v731
        %v737 = vpack.c.bf16 %v734, %v733
        %vm738 = vcmask 261121
        %739 = vst.msk [vmem:[#allocation2] sm:$0xfe] %vm738, %v735
        %vm740 = vcmask 261120
        %741 = vst.msk [vmem:[#allocation2 + $0x8] sm:$0xff] %vm740, %v736
        %vm742 = vcmask 260096
        %743 = vst.msk [vmem:[#allocation2 + $0x10] sm:$0x7f] %vm742, %v737
        %v744 = vld [vmem:[#allocation2] sm:$0xfe]
        %v745 = vld [vmem:[#allocation2 + $0x8] sm:$0xff]
        %v746 = vld [vmem:[#allocation2 + $0x10] sm:$0x1f]
        %v747 = vld [vmem:[%s2] sm:$0xf]
        %v748 = vld [vmem:[%s2 + $0x4] sm:$0xf]
        %v749 = vld [vmem:[%s2 + $0x8] sm:$0xf]
        %v750 = vld [vmem:[%s2 + $0xc] sm:$0xf]
        %v751 = vld [vmem:[#allocation2] sm:$0xfc]
        %v752 = vld [vmem:[#allocation2 + $0x10] sm:$0x3f]
        %s753 = scalar_lea.vmem %s2, 16
        %v754 = vld [vmem:[%s753] sm:$0xf]
        %v755 = vld [vmem:[%s753 + $0x4] sm:$0xf]
        %v756 = vld [vmem:[%s753 + $0x8] sm:$0xf]
        %v757 = vld [vmem:[%s753 + $0xc] sm:$0xf]
        %vm761 = vcmask 1045504
        %v762 = vrot.slane %v751, 2
        %v763 = vrot.slane %v745, 2
        %v764 = vsel %vm761, %v762, %v763
        %v765 = vrot.slane %v752, 2
        %v766 = vsel %vm761, %v763, %v765
        %v771 = vunpack.c.l.b16 %v754
        %v772 = vunpack.c.l.b16 %v755
        %v773 = vunpack.c.l.b16 %v756
        %v774 = vunpack.c.l.b16 %v757
        %v775 = vpack.c.b16 %v772, %v771
        %v776 = vpack.c.b16 %v774, %v773
        %v780 = vsel %vm740, %v764, 0
        %v783 = vsel %vm740, %v766, 0
        %v786 = vsel %vm740, %v765, 0
        %788 = vmatprep.subr.bf16.mxu0 0
        %789 = vmatpush1.bf16.msra.mxu0 %v775
        %790 = vmatprep.subr.bf16.mxu0 0
        %791 = vmatpush1.bf16.msra.mxu0 %v776
        %792 = vmatprep.subr.bf16.mxu0 0
        %793 = vmatpush1.bf16.msra.mxu0 0
        %794 = vmatprep.subr.bf16.mxu0 0
        %795 = vmatpush1.bf16.msra.mxu0 0
        %796 = vmatprep.subr.bf16.mxu0 0
        %797 = vmatpush1.bf16.msra.mxu0 0
        %798 = vmatprep.subr.bf16.mxu0 0
        %799 = vmatpush1.bf16.msra.mxu0 0
        %800 = vmatprep.subr.bf16.mxu0 0
        %801 = vmatpush1.bf16.msra.mxu0 0
        %802 = vmatprep.subr.bf16.mxu0 0
        %803 = vmatpush1.bf16.msra.mxu0 0
        %804 = vmatprep.subr.bf16.mxu0 0
        %805 = vmatpush1.bf16.msra.mxu0 0
        %806 = vmatprep.subr.bf16.mxu0 0
        %807 = vmatpush1.bf16.msra.mxu0 0
        %808 = vmatprep.subr.bf16.mxu0 0
        %809 = vmatpush1.bf16.msra.mxu0 0
        %810 = vmatprep.subr.bf16.mxu0 0
        %811 = vmatpush1.bf16.msra.mxu0 0
        %812 = vmatprep.subr.bf16.mxu0 0
        %813 = vmatpush1.bf16.msra.mxu0 0
        %814 = vmatprep.subr.bf16.mxu0 0
        %815 = vmatpush1.bf16.msra.mxu0 0
        %816 = vmatprep.subr.bf16.mxu0 0
        %817 = vmatpush1.bf16.msra.mxu0 0
        %818 = vmatprep.subr.bf16.mxu0 0
        %819 = vmatpush1.bf16.msra.mxu0 0
        %820 = vmatprep.mubr.bf16.mxu0 0
        %821 = vmatmul.mubr.bf16.gmra.mrb[0].mxu0 %v780
        %v822 = vpop.f32.mrb[0].mxu0
        %v823 = vadd.f32 0.0, %v822
        %v824 = vpop.f32.mrb[0].mxu0
        %v825 = vpop.f32.mrb[0].mxu0
        %v826 = vadd.f32 0.0, %v825
        %v827 = vpop.f32.mrb[0].mxu0
        %828 = vmatprep.mubr.bf16.mxu0 0
        %829 = vmatmul.mubr.bf16.gmra.mrb[0].mxu0 %v783
        %v830 = vpop.f32.mrb[0].mxu0
        %v831 = vadd.f32 0.0, %v830
        %v832 = vpop.f32.mrb[0].mxu0
        %v833 = vpop.f32.mrb[0].mxu0
        %v834 = vadd.f32 0.0, %v833
        %v835 = vpop.f32.mrb[0].mxu0
        %836 = vmatprep.mubr.bf16.mxu0 0
        %837 = vmatmul.mubr.bf16.gmra.mrb[0].mxu0 %v786
        %v838 = vpop.f32.mrb[0].mxu0
        %v839 = vadd.f32 0.0, %v838
        %v840 = vpop.f32.mrb[0].mxu0
        %v841 = vpop.f32.mrb[0].mxu0
        %v842 = vpop.f32.mrb[0].mxu0
        %843 = vdwg.mxu0
        %vm846 = vcmask 1046528
        %v847 = vrot.slane %v744, 1
        %v848 = vrot.slane %v745, 1
        %v849 = vsel %vm846, %v847, %v848
        %v850 = vrot.slane %v746, 1
        %v851 = vsel %vm846, %v848, %v850
        %v856 = vunpack.c.l.b16 %v747
        %v857 = vunpack.c.l.b16 %v748
        %v858 = vunpack.c.l.b16 %v749
        %v859 = vunpack.c.l.b16 %v750
        %v860 = vpack.c.b16 %v857, %v856
        %v861 = vpack.c.b16 %v859, %v858
        %v865 = vsel %vm740, %v849, 0
        %v868 = vsel %vm740, %v851, 0
        %v871 = vsel %vm740, %v850, 0
        %873 = vmatprep.subr.bf16.mxu0 0
        %874 = vmatpush1.bf16.msra.mxu0 %v860
        %875 = vmatprep.subr.bf16.mxu0 0
        %876 = vmatpush1.bf16.msra.mxu0 %v861
        %877 = vmatprep.subr.bf16.mxu0 0
        %878 = vmatpush1.bf16.msra.mxu0 0
        %879 = vmatprep.subr.bf16.mxu0 0
        %880 = vmatpush1.bf16.msra.mxu0 0
        %881 = vmatprep.subr.bf16.mxu0 0
        %882 = vmatpush1.bf16.msra.mxu0 0
        %883 = vmatprep.subr.bf16.mxu0 0
        %884 = vmatpush1.bf16.msra.mxu0 0
        %885 = vmatprep.subr.bf16.mxu0 0
        %886 = vmatpush1.bf16.msra.mxu0 0
        %887 = vmatprep.subr.bf16.mxu0 0
        %888 = vmatpush1.bf16.msra.mxu0 0
        %889 = vmatprep.subr.bf16.mxu0 0
        %890 = vmatpush1.bf16.msra.mxu0 0
        %891 = vmatprep.subr.bf16.mxu0 0
        %892 = vmatpush1.bf16.msra.mxu0 0
        %893 = vmatprep.subr.bf16.mxu0 0
        %894 = vmatpush1.bf16.msra.mxu0 0
        %895 = vmatprep.subr.bf16.mxu0 0
        %896 = vmatpush1.bf16.msra.mxu0 0
        %897 = vmatprep.subr.bf16.mxu0 0
        %898 = vmatpush1.bf16.msra.mxu0 0
        %899 = vmatprep.subr.bf16.mxu0 0
        %900 = vmatpush1.bf16.msra.mxu0 0
        %901 = vmatprep.subr.bf16.mxu0 0
        %902 = vmatpush1.bf16.msra.mxu0 0
        %903 = vmatprep.subr.bf16.mxu0 0
        %904 = vmatpush1.bf16.msra.mxu0 0
        %905 = vmatprep.mubr.bf16.mxu0 0
        %906 = vmatmul.mubr.bf16.gmra.mrb[0].mxu0 %v865
        %v907 = vpop.f32.mrb[0].mxu0
        %v908 = vadd.f32 %v823, %v907
        %v909 = vpop.f32.mrb[0].mxu0
        %v910 = vpop.f32.mrb[0].mxu0
        %v911 = vadd.f32 %v826, %v910
        %v912 = vpop.f32.mrb[0].mxu0
        %913 = vmatprep.mubr.bf16.mxu0 0
        %914 = vmatmul.mubr.bf16.gmra.mrb[0].mxu0 %v868
        %v915 = vpop.f32.mrb[0].mxu0
        %v916 = vadd.f32 %v831, %v915
        %v917 = vpop.f32.mrb[0].mxu0
        %v918 = vpop.f32.mrb[0].mxu0
        %v919 = vadd.f32 %v834, %v918
        %v920 = vpop.f32.mrb[0].mxu0
        %921 = vmatprep.mubr.bf16.mxu0 0
        %922 = vmatmul.mubr.bf16.gmra.mrb[0].mxu0 %v871
        %v923 = vpop.f32.mrb[0].mxu0
        %v924 = vadd.f32 %v839, %v923
        %v925 = vpop.f32.mrb[0].mxu0
        %v926 = vpop.f32.mrb[0].mxu0
        %v927 = vpop.f32.mrb[0].mxu0
        %928 = vdwg.mxu0
        %v929 = vld [vmem:[#allocation2] sm:$0xf8]
        %v930 = vld [vmem:[#allocation2 + $0x10] sm:$0x7f]
        %s931 = scalar_lea.vmem %s2, 32
        %v932 = vld [vmem:[%s931] sm:$0xf]
        %v933 = vld [vmem:[%s931 + $0x4] sm:$0xf]
        %v934 = vld [vmem:[%s931 + $0x8] sm:$0xf]
        %v935 = vld [vmem:[%s931 + $0xc] sm:$0xf]
        %vm938 = vcmask 1044480
        %v939 = vrot.slane %v929, 3
        %v940 = vrot.slane %v745, 3
        %v941 = vsel %vm938, %v939, %v940
        %v942 = vrot.slane %v930, 3
        %v943 = vsel %vm938, %v940, %v942
        %v948 = vunpack.c.l.b16 %v932
        %v949 = vunpack.c.l.b16 %v933
        %v950 = vunpack.c.l.b16 %v934
        %v951 = vunpack.c.l.b16 %v935
        %v952 = vpack.c.b16 %v949, %v948
        %v953 = vpack.c.b16 %v951, %v950
        %v957 = vsel %vm740, %v941, 0
        %v960 = vsel %vm740, %v943, 0
        %v963 = vsel %vm740, %v942, 0
        %965 = vmatprep.subr.bf16.mxu0 0
        %966 = vmatpush1.bf16.msra.mxu0 %v952
        %967 = vmatprep.subr.bf16.mxu0 0
        %968 = vmatpush1.bf16.msra.mxu0 %v953
        %969 = vmatprep.subr.bf16.mxu0 0
        %970 = vmatpush1.bf16.msra.mxu0 0
        %971 = vmatprep.subr.bf16.mxu0 0
        %972 = vmatpush1.bf16.msra.mxu0 0
        %973 = vmatprep.subr.bf16.mxu0 0
        %974 = vmatpush1.bf16.msra.mxu0 0
        %975 = vmatprep.subr.bf16.mxu0 0
        %976 = vmatpush1.bf16.msra.mxu0 0
        %977 = vmatprep.subr.bf16.mxu0 0
        %978 = vmatpush1.bf16.msra.mxu0 0
        %979 = vmatprep.subr.bf16.mxu0 0
        %980 = vmatpush1.bf16.msra.mxu0 0
        %981 = vmatprep.subr.bf16.mxu0 0
        %982 = vmatpush1.bf16.msra.mxu0 0
        %983 = vmatprep.subr.bf16.mxu0 0
        %984 = vmatpush1.bf16.msra.mxu0 0
        %985 = vmatprep.subr.bf16.mxu0 0
        %986 = vmatpush1.bf16.msra.mxu0 0
        %987 = vmatprep.subr.bf16.mxu0 0
        %988 = vmatpush1.bf16.msra.mxu0 0
        %989 = vmatprep.subr.bf16.mxu0 0
        %990 = vmatpush1.bf16.msra.mxu0 0
        %991 = vmatprep.subr.bf16.mxu0 0
        %992 = vmatpush1.bf16.msra.mxu0 0
        %993 = vmatprep.subr.bf16.mxu0 0
        %994 = vmatpush1.bf16.msra.mxu0 0
        %995 = vmatprep.subr.bf16.mxu0 0
        %996 = vmatpush1.bf16.msra.mxu0 0
        %997 = vmatprep.mubr.bf16.mxu0 0
        %998 = vmatmul.mubr.bf16.gmra.mrb[0].mxu0 %v957
        %v999 = vpop.f32.mrb[0].mxu0
        %v1000 = vadd.f32 0.0, %v999
        %v1001 = vpop.f32.mrb[0].mxu0
        %v1002 = vpop.f32.mrb[0].mxu0
        %v1003 = vadd.f32 0.0, %v1002
        %v1004 = vpop.f32.mrb[0].mxu0
        %1005 = vmatprep.mubr.bf16.mxu0 0
        %1006 = vmatmul.mubr.bf16.gmra.mrb[0].mxu0 %v960
        %v1007 = vpop.f32.mrb[0].mxu0
        %v1008 = vadd.f32 0.0, %v1007
        %v1009 = vpop.f32.mrb[0].mxu0
        %v1010 = vpop.f32.mrb[0].mxu0
        %v1011 = vadd.f32 0.0, %v1010
        %v1012 = vpop.f32.mrb[0].mxu0
        %1013 = vmatprep.mubr.bf16.mxu0 0
        %1014 = vmatmul.mubr.bf16.gmra.mrb[0].mxu0 %v963
        %v1015 = vpop.f32.mrb[0].mxu0
        %v1016 = vadd.f32 0.0, %v1015
        %v1017 = vpop.f32.mrb[0].mxu0
        %v1018 = vpop.f32.mrb[0].mxu0
        %v1019 = vpop.f32.mrb[0].mxu0
        %1020 = vdwg.mxu0
        %v1021 = vadd.f32 %v908, %v1000
        %v1022 = vadd.f32 %v911, %v1003
        %v1023 = vadd.f32 %v916, %v1008
        %v1024 = vadd.f32 %v919, %v1011
        %v1025 = vadd.f32 %v924, %v1016
        %s1026 = scalar_lea.vmem %s3, 1
        %v1027 = vld [vmem:[%s1026] sm:$0x1]
        %v1029 = vlaneseq
        %v1030 = vshrl.u32 %v1029, 7
        %v1031 = vsub.s32 0, %v1030
        %v1032 = vrot.slane %v1027, %v1031
        %v1034 = vadd.f32 %v1021, %v1032
        %v1035 = vadd.f32 %v1022, %v1032
        %v1036 = vadd.f32 %v1023, %v1032
        %v1037 = vadd.f32 %v1024, %v1032
        %v1038 = vadd.f32 %v1025, %v1032
        %vm1039 = vcmp.gt.f32.partialorder %v1034, 0.0
        %vm1040 = vcmp.gt.f32.partialorder %v1035, 0.0
        %vm1041 = vcmp.gt.f32.partialorder %v1036, 0.0
        %vm1042 = vcmp.gt.f32.partialorder %v1037, 0.0
        %vm1043 = vcmp.gt.f32.partialorder %v1038, 0.0
        %v1044 = vmin.f32 %v1034, 0.0
        %v1045 = vmin.f32 %v1035, 0.0
        %v1046 = vmin.f32 %v1036, 0.0
        %v1047 = vmin.f32 %v1037, 0.0
        %v1048 = vmin.f32 %v1038, 0.0
        %v1049 = vmul.f32 %v1044, 1.442695
        %v1050 = vpow.pop %v1049
        %v1051 = vmul.f32 %v1045, 1.442695
        %v1052 = vpow.pop %v1051
        %v1053 = vmul.f32 %v1046, 1.442695
        %v1054 = vpow.pop %v1053
        %v1055 = vmul.f32 %v1047, 1.442695
        %v1056 = vpow.pop %v1055
        %v1057 = vmul.f32 %v1048, 1.442695
        %v1058 = vpow.pop %v1057
        %v1059 = vsub.f32 %v1050, 1.0
        %v1060 = vsub.f32 %v1052, 1.0
        %v1061 = vsub.f32 %v1054, 1.0
        %v1062 = vsub.f32 %v1056, 1.0
        %v1063 = vsub.f32 %v1058, 1.0
        %v1064 = vsel %vm1039, %v1034, %v1059
        %v1065 = vsel %vm1040, %v1035, %v1060
        %v1066 = vsel %vm1041, %v1036, %v1061
        %v1067 = vsel %vm1042, %v1037, %v1062
        %v1068 = vsel %vm1043, %v1038, %v1063
        %v1074 = vrot.slane %v1064, 4
        %v1075 = vrot.slane %v1065, 4
        %v1076 = vsel %vm293, %v1074, %v1075
        %v1077 = vrot.slane %v1066, 4
        %v1078 = vsel %vm293, %v1075, %v1077
        %v1079 = vrot.slane %v1067, 4
        %v1080 = vsel %vm293, %v1077, %v1079
        %v1081 = vrot.slane %v1068, 4
        %v1082 = vsel %vm293, %v1079, %v1081
        %v1089 = vsel %vm699, %v1074, 0.0
        %v1090 = vsel %vm700, %v1076, 0.0
        %v1091 = vsel %vm701, %v1078, 0.0
        %v1092 = vsel %vm702, %v1080, 0.0
        %v1093 = vsel %vm703, %v1082, 0.0
        %v1094 = vsel %vm704, %v1081, 0.0
        %v1095 = vpack.c.bf16 %v1090, %v1089
        %v1096 = vpack.c.bf16 %v1092, %v1091
        %v1097 = vpack.c.bf16 %v1094, %v1093
        %vm1098 = vcmask 261122
        %1099 = vst.msk [vmem:[#allocation2] sm:$0xfc] %vm1098, %v1095
        %1100 = vst.msk [vmem:[#allocation2 + $0x8] sm:$0xff] %vm740, %v1096
        %vm1101 = vcmask 259072
        %1102 = vst.msk [vmem:[#allocation2 + $0x10] sm:$0x3f] %vm1101, %v1097
        %v1103 = vld [vmem:[#allocation2] sm:$0xfc]
        %v1104 = vld [vmem:[#allocation2 + $0x8] sm:$0xff]
        %v1105 = vld [vmem:[#allocation2 + $0x10] sm:$0x7]
        %s1106 = scalar_lea.vmem %s2, 48
        %v1107 = vld [vmem:[%s1106] sm:$0xf]
        %v1108 = vld [vmem:[%s1106 + $0x4] sm:$0xf]
        %v1109 = vld [vmem:[%s1106 + $0x8] sm:$0xf]
        %v1110 = vld [vmem:[%s1106 + $0xc] sm:$0xf]
        %v1111 = vld [vmem:[#allocation2] sm:$0xf8]
        %v1112 = vld [vmem:[#allocation2 + $0x10] sm:$0x1f]
        %s1113 = scalar_lea.vmem %s2, 64
        %v1114 = vld [vmem:[%s1113] sm:$0xf]
        %v1115 = vld [vmem:[%s1113 + $0x4] sm:$0xf]
        %v1116 = vld [vmem:[%s1113 + $0x8] sm:$0xf]
        %v1117 = vld [vmem:[%s1113 + $0xc] sm:$0xf]
        %vm1118 = vsmask.f32 4352
        %v1120 = vshrl.u32 %v1111, 16
        %v1122 = vrot.slane %v1120, 3
        %v1123 = vshll.u32 %v1111, 16
        %v1125 = vrot.slane %v1123, 4
        %v1126 = vor.u32 %v1122, %v1125
        %v1128 = vshrl.u32 %v1104, 16
        %v1130 = vrot.slane %v1128, 3
        %v1131 = vshll.u32 %v1104, 16
        %v1133 = vrot.slane %v1131, 4
        %v1134 = vor.u32 %v1130, %v1133
        %v1135 = vsel %vm1118, %v1126, %v1134
        %v1137 = vshrl.u32 %v1112, 16
        %v1139 = vrot.slane %v1137, 3
        %v1140 = vshll.u32 %v1112, 16
        %v1142 = vrot.slane %v1140, 4
        %v1143 = vor.u32 %v1139, %v1142
        %v1144 = vsel %vm1118, %v1134, %v1143
        %v1149 = vunpack.c.l.b16 %v1114
        %v1150 = vunpack.c.l.b16 %v1115
        %v1151 = vunpack.c.l.b16 %v1116
        %v1152 = vunpack.c.l.b16 %v1117
        %v1153 = vpack.c.b16 %v1150, %v1149
        %v1154 = vpack.c.b16 %v1152, %v1151
        %v1158 = vsel %vm740, %v1135, 0
        %v1161 = vsel %vm740, %v1144, 0
        %v1164 = vsel %vm740, %v1143, 0
        %1166 = vmatprep.subr.bf16.mxu0 0
        %1167 = vmatpush1.bf16.msra.mxu0 %v1153
        %1168 = vmatprep.subr.bf16.mxu0 0
        %1169 = vmatpush1.bf16.msra.mxu0 %v1154
        %1170 = vmatprep.subr.bf16.mxu0 0
        %1171 = vmatpush1.bf16.msra.mxu0 0
        %1172 = vmatprep.subr.bf16.mxu0 0
        %1173 = vmatpush1.bf16.msra.mxu0 0
        %1174 = vmatprep.subr.bf16.mxu0 0
        %1175 = vmatpush1.bf16.msra.mxu0 0
        %1176 = vmatprep.subr.bf16.mxu0 0
        %1177 = vmatpush1.bf16.msra.mxu0 0
        %1178 = vmatprep.subr.bf16.mxu0 0
        %1179 = vmatpush1.bf16.msra.mxu0 0
        %1180 = vmatprep.subr.bf16.mxu0 0
        %1181 = vmatpush1.bf16.msra.mxu0 0
        %1182 = vmatprep.subr.bf16.mxu0 0
        %1183 = vmatpush1.bf16.msra.mxu0 0
        %1184 = vmatprep.subr.bf16.mxu0 0
        %1185 = vmatpush1.bf16.msra.mxu0 0
        %1186 = vmatprep.subr.bf16.mxu0 0
        %1187 = vmatpush1.bf16.msra.mxu0 0
        %1188 = vmatprep.subr.bf16.mxu0 0
        %1189 = vmatpush1.bf16.msra.mxu0 0
        %1190 = vmatprep.subr.bf16.mxu0 0
        %1191 = vmatpush1.bf16.msra.mxu0 0
        %1192 = vmatprep.subr.bf16.mxu0 0
        %1193 = vmatpush1.bf16.msra.mxu0 0
        %1194 = vmatprep.subr.bf16.mxu0 0
        %1195 = vmatpush1.bf16.msra.mxu0 0
        %1196 = vmatprep.subr.bf16.mxu0 0
        %1197 = vmatpush1.bf16.msra.mxu0 0
        %1198 = vmatprep.mubr.bf16.mxu0 0
        %1199 = vmatmul.mubr.bf16.gmra.mrb[0].mxu0 %v1158
        %v1200 = vpop.f32.mrb[0].mxu0
        %v1201 = vadd.f32 0.0, %v1200
        %v1202 = vpop.f32.mrb[0].mxu0
        %v1203 = vpop.f32.mrb[0].mxu0
        %v1204 = vadd.f32 0.0, %v1203
        %v1205 = vpop.f32.mrb[0].mxu0
        %1206 = vmatprep.mubr.bf16.mxu0 0
        %1207 = vmatmul.mubr.bf16.gmra.mrb[0].mxu0 %v1161
        %v1208 = vpop.f32.mrb[0].mxu0
        %v1209 = vadd.f32 0.0, %v1208
        %v1210 = vpop.f32.mrb[0].mxu0
        %v1211 = vpop.f32.mrb[0].mxu0
        %v1212 = vadd.f32 0.0, %v1211
        %v1213 = vpop.f32.mrb[0].mxu0
        %1214 = vmatprep.mubr.bf16.mxu0 0
        %1215 = vmatmul.mubr.bf16.gmra.mrb[0].mxu0 %v1164
        %v1216 = vpop.f32.mrb[0].mxu0
        %v1217 = vadd.f32 0.0, %v1216
        %v1218 = vpop.f32.mrb[0].mxu0
        %v1219 = vpop.f32.mrb[0].mxu0
        %v1220 = vpop.f32.mrb[0].mxu0
        %1221 = vdwg.mxu0
        %v1225 = vrot.slane %v1103, 2
        %v1226 = vrot.slane %v1104, 2
        %v1227 = vsel %vm761, %v1225, %v1226
        %v1228 = vrot.slane %v1105, 2
        %v1229 = vsel %vm761, %v1226, %v1228
        %v1234 = vunpack.c.l.b16 %v1107
        %v1235 = vunpack.c.l.b16 %v1108
        %v1236 = vunpack.c.l.b16 %v1109
        %v1237 = vunpack.c.l.b16 %v1110
        %v1238 = vpack.c.b16 %v1235, %v1234
        %v1239 = vpack.c.b16 %v1237, %v1236
        %v1243 = vsel %vm740, %v1227, 0
        %v1246 = vsel %vm740, %v1229, 0
        %v1249 = vsel %vm740, %v1228, 0
        %1251 = vmatprep.subr.bf16.mxu0 0
        %1252 = vmatpush1.bf16.msra.mxu0 %v1238
        %1253 = vmatprep.subr.bf16.mxu0 0
        %1254 = vmatpush1.bf16.msra.mxu0 %v1239
        %1255 = vmatprep.subr.bf16.mxu0 0
        %1256 = vmatpush1.bf16.msra.mxu0 0
        %1257 = vmatprep.subr.bf16.mxu0 0
        %1258 = vmatpush1.bf16.msra.mxu0 0
        %1259 = vmatprep.subr.bf16.mxu0 0
        %1260 = vmatpush1.bf16.msra.mxu0 0
        %1261 = vmatprep.subr.bf16.mxu0 0
        %1262 = vmatpush1.bf16.msra.mxu0 0
        %1263 = vmatprep.subr.bf16.mxu0 0
        %1264 = vmatpush1.bf16.msra.mxu0 0
        %1265 = vmatprep.subr.bf16.mxu0 0
        %1266 = vmatpush1.bf16.msra.mxu0 0
        %1267 = vmatprep.subr.bf16.mxu0 0
        %1268 = vmatpush1.bf16.msra.mxu0 0
        %1269 = vmatprep.subr.bf16.mxu0 0
        %1270 = vmatpush1.bf16.msra.mxu0 0
        %1271 = vmatprep.subr.bf16.mxu0 0
        %1272 = vmatpush1.bf16.msra.mxu0 0
        %1273 = vmatprep.subr.bf16.mxu0 0
        %1274 = vmatpush1.bf16.msra.mxu0 0
        %1275 = vmatprep.subr.bf16.mxu0 0
        %1276 = vmatpush1.bf16.msra.mxu0 0
        %1277 = vmatprep.subr.bf16.mxu0 0
        %1278 = vmatpush1.bf16.msra.mxu0 0
        %1279 = vmatprep.subr.bf16.mxu0 0
        %1280 = vmatpush1.bf16.msra.mxu0 0
        %1281 = vmatprep.subr.bf16.mxu0 0
        %1282 = vmatpush1.bf16.msra.mxu0 0
        %1283 = vmatprep.mubr.bf16.mxu0 0
        %1284 = vmatmul.mubr.bf16.gmra.mrb[0].mxu0 %v1243
        %v1285 = vpop.f32.mrb[0].mxu0
        %v1286 = vadd.f32 %v1201, %v1285
        %v1287 = vpop.f32.mrb[0].mxu0
        %v1288 = vpop.f32.mrb[0].mxu0
        %v1289 = vadd.f32 %v1204, %v1288
        %v1290 = vpop.f32.mrb[0].mxu0
        %1291 = vmatprep.mubr.bf16.mxu0 0
        %1292 = vmatmul.mubr.bf16.gmra.mrb[0].mxu0 %v1246
        %v1293 = vpop.f32.mrb[0].mxu0
        %v1294 = vadd.f32 %v1209, %v1293
        %v1295 = vpop.f32.mrb[0].mxu0
        %v1296 = vpop.f32.mrb[0].mxu0
        %v1297 = vadd.f32 %v1212, %v1296
        %v1298 = vpop.f32.mrb[0].mxu0
        %1299 = vmatprep.mubr.bf16.mxu0 0
        %1300 = vmatmul.mubr.bf16.gmra.mrb[0].mxu0 %v1249
        %v1301 = vpop.f32.mrb[0].mxu0
        %v1302 = vadd.f32 %v1217, %v1301
        %v1303 = vpop.f32.mrb[0].mxu0
        %v1304 = vpop.f32.mrb[0].mxu0
        %v1305 = vpop.f32.mrb[0].mxu0
        %1306 = vdwg.mxu0
        %v1307 = vld [vmem:[#allocation2] sm:$0xe0]
        %v1308 = vld [vmem:[#allocation2 + $0x10] sm:$0x3f]
        %s1309 = scalar_lea.vmem %s2, 80
        %v1310 = vld [vmem:[%s1309] sm:$0xf]
        %v1311 = vld [vmem:[%s1309 + $0x4] sm:$0xf]
        %v1312 = vld [vmem:[%s1309 + $0x8] sm:$0xf]
        %v1313 = vld [vmem:[%s1309 + $0xc] sm:$0xf]
        %vm1316 = vcmask 1042432
        %v1317 = vrot.slane %v1307, 5
        %v1318 = vrot.slane %v1104, 5
        %v1319 = vsel %vm1316, %v1317, %v1318
        %v1320 = vrot.slane %v1308, 5
        %v1321 = vsel %vm1316, %v1318, %v1320
        %v1326 = vunpack.c.l.b16 %v1310
        %v1327 = vunpack.c.l.b16 %v1311
        %v1328 = vunpack.c.l.b16 %v1312
        %v1329 = vunpack.c.l.b16 %v1313
        %v1330 = vpack.c.b16 %v1327, %v1326
        %v1331 = vpack.c.b16 %v1329, %v1328
        %v1335 = vsel %vm740, %v1319, 0
        %v1338 = vsel %vm740, %v1321, 0
        %v1341 = vsel %vm740, %v1320, 0
        %1343 = vmatprep.subr.bf16.mxu0 0
        %1344 = vmatpush1.bf16.msra.mxu0 %v1330
        %1345 = vmatprep.subr.bf16.mxu0 0
        %1346 = vmatpush1.bf16.msra.mxu0 %v1331
        %1347 = vmatprep.subr.bf16.mxu0 0
        %1348 = vmatpush1.bf16.msra.mxu0 0
        %1349 = vmatprep.subr.bf16.mxu0 0
        %1350 = vmatpush1.bf16.msra.mxu0 0
        %1351 = vmatprep.subr.bf16.mxu0 0
        %1352 = vmatpush1.bf16.msra.mxu0 0
        %1353 = vmatprep.subr.bf16.mxu0 0
        %1354 = vmatpush1.bf16.msra.mxu0 0
        %1355 = vmatprep.subr.bf16.mxu0 0
        %1356 = vmatpush1.bf16.msra.mxu0 0
        %1357 = vmatprep.subr.bf16.mxu0 0
        %1358 = vmatpush1.bf16.msra.mxu0 0
        %1359 = vmatprep.subr.bf16.mxu0 0
        %1360 = vmatpush1.bf16.msra.mxu0 0
        %1361 = vmatprep.subr.bf16.mxu0 0
        %1362 = vmatpush1.bf16.msra.mxu0 0
        %1363 = vmatprep.subr.bf16.mxu0 0
        %1364 = vmatpush1.bf16.msra.mxu0 0
        %1365 = vmatprep.subr.bf16.mxu0 0
        %1366 = vmatpush1.bf16.msra.mxu0 0
        %1367 = vmatprep.subr.bf16.mxu0 0
        %1368 = vmatpush1.bf16.msra.mxu0 0
        %1369 = vmatprep.subr.bf16.mxu0 0
        %1370 = vmatpush1.bf16.msra.mxu0 0
        %1371 = vmatprep.subr.bf16.mxu0 0
        %1372 = vmatpush1.bf16.msra.mxu0 0
        %1373 = vmatprep.subr.bf16.mxu0 0
        %1374 = vmatpush1.bf16.msra.mxu0 0
        %1375 = vmatprep.mubr.bf16.mxu0 0
        %1376 = vmatmul.mubr.bf16.gmra.mrb[0].mxu0 %v1335
        %v1377 = vpop.f32.mrb[0].mxu0
        %v1378 = vadd.f32 0.0, %v1377
        %v1379 = vpop.f32.mrb[0].mxu0
        %v1380 = vpop.f32.mrb[0].mxu0
        %v1381 = vadd.f32 0.0, %v1380
        %v1382 = vpop.f32.mrb[0].mxu0
        %1383 = vmatprep.mubr.bf16.mxu0 0
        %1384 = vmatmul.mubr.bf16.gmra.mrb[0].mxu0 %v1338
        %v1385 = vpop.f32.mrb[0].mxu0
        %v1386 = vadd.f32 0.0, %v1385
        %v1387 = vpop.f32.mrb[0].mxu0
        %v1388 = vpop.f32.mrb[0].mxu0
        %v1389 = vadd.f32 0.0, %v1388
        %v1390 = vpop.f32.mrb[0].mxu0
        %1391 = vmatprep.mubr.bf16.mxu0 0
        %1392 = vmatmul.mubr.bf16.gmra.mrb[0].mxu0 %v1341
        %v1393 = vpop.f32.mrb[0].mxu0
        %v1394 = vadd.f32 0.0, %v1393
        %v1395 = vpop.f32.mrb[0].mxu0
        %v1396 = vpop.f32.mrb[0].mxu0
        %v1397 = vpop.f32.mrb[0].mxu0
        %1398 = vdwg.mxu0
        %v1399 = vadd.f32 %v1286, %v1378
        %v1400 = vadd.f32 %v1289, %v1381
        %v1401 = vadd.f32 %v1294, %v1386
        %v1402 = vadd.f32 %v1297, %v1389
        %v1403 = vadd.f32 %v1302, %v1394
        %s1404 = scalar_lea.vmem %s3, 2
        %v1405 = vld [vmem:[%s1404] sm:$0x1]
        %v1407 = vlaneseq
        %v1408 = vshrl.u32 %v1407, 7
        %v1409 = vsub.s32 0, %v1408
        %v1410 = vrot.slane %v1405, %v1409
        %v1412 = vadd.f32 %v1399, %v1410
        %v1413 = vadd.f32 %v1400, %v1410
        %v1414 = vadd.f32 %v1401, %v1410
        %v1415 = vadd.f32 %v1402, %v1410
        %v1416 = vadd.f32 %v1403, %v1410
        %vm1417 = vcmp.gt.f32.partialorder %v1412, 0.0
        %vm1418 = vcmp.gt.f32.partialorder %v1413, 0.0
        %vm1419 = vcmp.gt.f32.partialorder %v1414, 0.0
        %vm1420 = vcmp.gt.f32.partialorder %v1415, 0.0
        %vm1421 = vcmp.gt.f32.partialorder %v1416, 0.0
        %v1422 = vmin.f32 %v1412, 0.0
        %v1423 = vmin.f32 %v1413, 0.0
        %v1424 = vmin.f32 %v1414, 0.0
        %v1425 = vmin.f32 %v1415, 0.0
        %v1426 = vmin.f32 %v1416, 0.0
        %v1427 = vmul.f32 %v1422, 1.442695
        %v1428 = vpow.pop %v1427
        %v1429 = vmul.f32 %v1423, 1.442695
        %v1430 = vpow.pop %v1429
        %v1431 = vmul.f32 %v1424, 1.442695
        %v1432 = vpow.pop %v1431
        %v1433 = vmul.f32 %v1425, 1.442695
        %v1434 = vpow.pop %v1433
        %v1435 = vmul.f32 %v1426, 1.442695
        %v1436 = vpow.pop %v1435
        %v1437 = vsub.f32 %v1428, 1.0
        %v1438 = vsub.f32 %v1430, 1.0
        %v1439 = vsub.f32 %v1432, 1.0
        %v1440 = vsub.f32 %v1434, 1.0
        %v1441 = vsub.f32 %v1436, 1.0
        %v1442 = vsel %vm1417, %v1412, %v1437
        %v1443 = vsel %vm1418, %v1413, %v1438
        %v1444 = vsel %vm1419, %v1414, %v1439
        %v1445 = vsel %vm1420, %v1415, %v1440
        %v1446 = vsel %vm1421, %v1416, %v1441
        %v1452 = vrot.slane %v1442, 1
        %v1453 = vrot.slane %v1443, 1
        %v1454 = vsel %vm392, %v1452, %v1453
        %v1455 = vrot.slane %v1444, 1
        %v1456 = vsel %vm392, %v1453, %v1455
        %v1457 = vrot.slane %v1445, 1
        %v1458 = vsel %vm392, %v1455, %v1457
        %v1459 = vrot.slane %v1446, 1
        %v1460 = vsel %vm392, %v1457, %v1459
        %v1467 = vsel %vm699, %v1452, 0.0
        %v1468 = vsel %vm700, %v1454, 0.0
        %v1469 = vsel %vm701, %v1456, 0.0
        %v1470 = vsel %vm702, %v1458, 0.0
        %v1471 = vsel %vm703, %v1460, 0.0
        %v1472 = vsel %vm704, %v1459, 0.0
        %v1473 = vpack.c.bf16 %v1468, %v1467
        %v1474 = vpack.c.bf16 %v1470, %v1469
        %v1475 = vpack.c.bf16 %v1472, %v1471
        %vm1476 = vcmask 261123
        %vm1477 = vsmask.f32 7950
        %vm1478 = vmand %vm1476, %vm1477
        %v1479 = vsel %vm1478, %v1473, %v1111
        %1480 = vst [vmem:[#allocation2] sm:$0xf8] %v1479
        %1481 = vst.msk [vmem:[#allocation2 + $0x8] sm:$0xff] %vm740, %v1474
        %vm1482 = vcmask 258048
        %vm1483 = vmand %vm1482, %vm1118
        %v1484 = vld [vmem:[#allocation2 + $0x10] sm:$0x1f]
        %v1485 = vsel %vm1483, %v1475, %v1484
        %1486 = vst [vmem:[#allocation2 + $0x10] sm:$0x1f] %v1485
        %v1487 = vld [vmem:[#allocation2] sm:$0xf8]
        %v1488 = vld [vmem:[#allocation2 + $0x8] sm:$0xff]
        %v1489 = vld [vmem:[#allocation2 + $0x10] sm:$0x1]
        %s1490 = scalar_lea.vmem %s2, 96
        %v1491 = vld [vmem:[%s1490] sm:$0xf]
        %v1492 = vld [vmem:[%s1490 + $0x4] sm:$0xf]
        %v1493 = vld [vmem:[%s1490 + $0x8] sm:$0xf]
        %v1494 = vld [vmem:[%s1490 + $0xc] sm:$0xf]
        %v1495 = vld [vmem:[#allocation2] sm:$0xe0]
        %v1496 = vld [vmem:[#allocation2 + $0x10] sm:$0x7]
        %s1497 = scalar_lea.vmem %s2, 112
        %v1498 = vld [vmem:[%s1497] sm:$0xf]
        %v1499 = vld [vmem:[%s1497 + $0x4] sm:$0xf]
        %v1500 = vld [vmem:[%s1497 + $0x8] sm:$0xf]
        %v1501 = vld [vmem:[%s1497 + $0xc] sm:$0xf]
        %vm1502 = vsmask.f32 2304
        %v1504 = vshrl.u32 %v1495, 16
        %v1506 = vrot.slane %v1504, 5
        %v1507 = vshll.u32 %v1495, 16
        %v1509 = vrot.slane %v1507, 6
        %v1510 = vor.u32 %v1506, %v1509
        %v1512 = vshrl.u32 %v1488, 16
        %v1514 = vrot.slane %v1512, 5
        %v1515 = vshll.u32 %v1488, 16
        %v1517 = vrot.slane %v1515, 6
        %v1518 = vor.u32 %v1514, %v1517
        %v1519 = vsel %vm1502, %v1510, %v1518
        %v1521 = vshrl.u32 %v1496, 16
        %v1523 = vrot.slane %v1521, 5
        %v1524 = vshll.u32 %v1496, 16
        %v1526 = vrot.slane %v1524, 6
        %v1527 = vor.u32 %v1523, %v1526
        %v1528 = vsel %vm1502, %v1518, %v1527
        %v1533 = vunpack.c.l.b16 %v1498
        %v1534 = vunpack.c.l.b16 %v1499
        %v1535 = vunpack.c.l.b16 %v1500
        %v1536 = vunpack.c.l.b16 %v1501
        %v1537 = vpack.c.b16 %v1534, %v1533
        %v1538 = vpack.c.b16 %v1536, %v1535
        %v1542 = vsel %vm740, %v1519, 0
        %v1545 = vsel %vm740, %v1528, 0
        %1547 = vmatprep.subr.bf16.mxu0 0
        %1548 = vmatpush1.bf16.msra.mxu0 %v1537
        %1549 = vmatprep.subr.bf16.mxu0 0
        %1550 = vmatpush1.bf16.msra.mxu0 %v1538
        %1551 = vmatprep.subr.bf16.mxu0 0
        %1552 = vmatpush1.bf16.msra.mxu0 0
        %1553 = vmatprep.subr.bf16.mxu0 0
        %1554 = vmatpush1.bf16.msra.mxu0 0
        %1555 = vmatprep.subr.bf16.mxu0 0
        %1556 = vmatpush1.bf16.msra.mxu0 0
        %1557 = vmatprep.subr.bf16.mxu0 0
        %1558 = vmatpush1.bf16.msra.mxu0 0
        %1559 = vmatprep.subr.bf16.mxu0 0
        %1560 = vmatpush1.bf16.msra.mxu0 0
        %1561 = vmatprep.subr.bf16.mxu0 0
        %1562 = vmatpush1.bf16.msra.mxu0 0
        %1563 = vmatprep.subr.bf16.mxu0 0
        %1564 = vmatpush1.bf16.msra.mxu0 0
        %1565 = vmatprep.subr.bf16.mxu0 0
        %1566 = vmatpush1.bf16.msra.mxu0 0
        %1567 = vmatprep.subr.bf16.mxu0 0
        %1568 = vmatpush1.bf16.msra.mxu0 0
        %1569 = vmatprep.subr.bf16.mxu0 0
        %1570 = vmatpush1.bf16.msra.mxu0 0
        %1571 = vmatprep.subr.bf16.mxu0 0
        %1572 = vmatpush1.bf16.msra.mxu0 0
        %1573 = vmatprep.subr.bf16.mxu0 0
        %1574 = vmatpush1.bf16.msra.mxu0 0
        %1575 = vmatprep.subr.bf16.mxu0 0
        %1576 = vmatpush1.bf16.msra.mxu0 0
        %1577 = vmatprep.subr.bf16.mxu0 0
        %1578 = vmatpush1.bf16.msra.mxu0 0
        %1579 = vmatprep.mubr.bf16.mxu0 0
        %1580 = vmatmul.mubr.bf16.gmra.mrb[0].mxu0 %v1542
        %v1581 = vpop.f32.mrb[0].mxu0
        %v1582 = vadd.f32 0.0, %v1581
        %v1583 = vpop.f32.mrb[0].mxu0
        %v1584 = vpop.f32.mrb[0].mxu0
        %v1585 = vadd.f32 0.0, %v1584
        %v1586 = vpop.f32.mrb[0].mxu0
        %1587 = vmatprep.mubr.bf16.mxu0 0
        %1588 = vmatmul.mubr.bf16.gmra.mrb[0].mxu0 %v1545
        %v1589 = vpop.f32.mrb[0].mxu0
        %v1590 = vadd.f32 0.0, %v1589
        %v1591 = vpop.f32.mrb[0].mxu0
        %v1592 = vpop.f32.mrb[0].mxu0
        %v1593 = vadd.f32 0.0, %v1592
        %v1594 = vpop.f32.mrb[0].mxu0
        %1595 = vdwg.mxu0
        %v1597 = vshrl.u32 %v1487, 16
        %v1599 = vrot.slane %v1597, 3
        %v1600 = vshll.u32 %v1487, 16
        %v1602 = vrot.slane %v1600, 4
        %v1603 = vor.u32 %v1599, %v1602
        %v1604 = vrot.slane %v1512, 3
        %v1605 = vrot.slane %v1515, 4
        %v1606 = vor.u32 %v1604, %v1605
        %v1607 = vsel %vm1118, %v1603, %v1606
        %v1609 = vshll.u32 %v1489, 16
        %v1611 = vrot.slane %v1609, 4
        %v1612 = vsel %vm1118, %v1606, %v1611
        %v1617 = vunpack.c.l.b16 %v1491
        %v1618 = vunpack.c.l.b16 %v1492
        %v1619 = vunpack.c.l.b16 %v1493
        %v1620 = vunpack.c.l.b16 %v1494
        %v1621 = vpack.c.b16 %v1618, %v1617
        %v1622 = vpack.c.b16 %v1620, %v1619
        %v1626 = vsel %vm740, %v1607, 0
        %v1629 = vsel %vm740, %v1612, 0
        %1631 = vmatprep.subr.bf16.mxu0 0
        %1632 = vmatpush1.bf16.msra.mxu0 %v1621
        %1633 = vmatprep.subr.bf16.mxu0 0
        %1634 = vmatpush1.bf16.msra.mxu0 %v1622
        %1635 = vmatprep.subr.bf16.mxu0 0
        %1636 = vmatpush1.bf16.msra.mxu0 0
        %1637 = vmatprep.subr.bf16.mxu0 0
        %1638 = vmatpush1.bf16.msra.mxu0 0
        %1639 = vmatprep.subr.bf16.mxu0 0
        %1640 = vmatpush1.bf16.msra.mxu0 0
        %1641 = vmatprep.subr.bf16.mxu0 0
        %1642 = vmatpush1.bf16.msra.mxu0 0
        %1643 = vmatprep.subr.bf16.mxu0 0
        %1644 = vmatpush1.bf16.msra.mxu0 0
        %1645 = vmatprep.subr.bf16.mxu0 0
        %1646 = vmatpush1.bf16.msra.mxu0 0
        %1647 = vmatprep.subr.bf16.mxu0 0
        %1648 = vmatpush1.bf16.msra.mxu0 0
        %1649 = vmatprep.subr.bf16.mxu0 0
        %1650 = vmatpush1.bf16.msra.mxu0 0
        %1651 = vmatprep.subr.bf16.mxu0 0
        %1652 = vmatpush1.bf16.msra.mxu0 0
        %1653 = vmatprep.subr.bf16.mxu0 0
        %1654 = vmatpush1.bf16.msra.mxu0 0
        %1655 = vmatprep.subr.bf16.mxu0 0
        %1656 = vmatpush1.bf16.msra.mxu0 0
        %1657 = vmatprep.subr.bf16.mxu0 0
        %1658 = vmatpush1.bf16.msra.mxu0 0
        %1659 = vmatprep.subr.bf16.mxu0 0
        %1660 = vmatpush1.bf16.msra.mxu0 0
        %1661 = vmatprep.subr.bf16.mxu0 0
        %1662 = vmatpush1.bf16.msra.mxu0 0
        %1663 = vmatprep.mubr.bf16.mxu0 0
        %1664 = vmatmul.mubr.bf16.gmra.mrb[0].mxu0 %v1626
        %v1665 = vpop.f32.mrb[0].mxu0
        %v1666 = vadd.f32 %v1582, %v1665
        %v1667 = vpop.f32.mrb[0].mxu0
        %v1668 = vpop.f32.mrb[0].mxu0
        %v1669 = vadd.f32 %v1585, %v1668
        %v1670 = vpop.f32.mrb[0].mxu0
        %1671 = vmatprep.mubr.bf16.mxu0 0
        %1672 = vmatmul.mubr.bf16.gmra.mrb[0].mxu0 %v1629
        %v1673 = vpop.f32.mrb[0].mxu0
        %v1674 = vadd.f32 %v1590, %v1673
        %v1675 = vpop.f32.mrb[0].mxu0
        %v1676 = vpop.f32.mrb[0].mxu0
        %v1677 = vadd.f32 %v1593, %v1676
        %v1678 = vpop.f32.mrb[0].mxu0
        %1679 = vdwg.mxu0
        %v1680 = vld [vmem:[#allocation2] sm:$0x80]
        %v1681 = vld [vmem:[#allocation2 + $0x10] sm:$0x1f]
        %s1682 = scalar_lea.vmem %s2, 128
        %v1683 = vld [vmem:[%s1682] sm:$0xf]
        %v1684 = vld [vmem:[%s1682 + $0x4] sm:$0xf]
        %v1685 = vld [vmem:[%s1682 + $0x8] sm:$0xf]
        %v1686 = vld [vmem:[%s1682 + $0xc] sm:$0xf]
        %vm1687 = vsmask.f32 256
        %v1689 = vshrl.u32 %v1680, 16
        %v1691 = vrot.slane %v1689, 7
        %v1692 = vrot.slane %v1512, 7
        %v1693 = vor.u32 %v1692, %v1515
        %v1694 = vsel %vm1687, %v1691, %v1693
        %v1696 = vshrl.u32 %v1681, 16
        %v1698 = vrot.slane %v1696, 7
        %v1699 = vshll.u32 %v1681, 16
        %v1701 = vor.u32 %v1698, %v1699
        %v1702 = vsel %vm1687, %v1692, %v1701
        %v1707 = vunpack.c.l.b16 %v1683
        %v1708 = vunpack.c.l.b16 %v1684
        %v1709 = vunpack.c.l.b16 %v1685
        %v1710 = vunpack.c.l.b16 %v1686
        %v1711 = vpack.c.b16 %v1708, %v1707
        %v1712 = vpack.c.b16 %v1710, %v1709
        %v1716 = vsel %vm740, %v1694, 0
        %v1719 = vsel %vm740, %v1702, 0
        %1721 = vmatprep.subr.bf16.mxu0 0
        %1722 = vmatpush1.bf16.msra.mxu0 %v1711
        %1723 = vmatprep.subr.bf16.mxu0 0
        %1724 = vmatpush1.bf16.msra.mxu0 %v1712
        %1725 = vmatprep.subr.bf16.mxu0 0
        %1726 = vmatpush1.bf16.msra.mxu0 0
        %1727 = vmatprep.subr.bf16.mxu0 0
        %1728 = vmatpush1.bf16.msra.mxu0 0
        %1729 = vmatprep.subr.bf16.mxu0 0
        %1730 = vmatpush1.bf16.msra.mxu0 0
        %1731 = vmatprep.subr.bf16.mxu0 0
        %1732 = vmatpush1.bf16.msra.mxu0 0
        %1733 = vmatprep.subr.bf16.mxu0 0
        %1734 = vmatpush1.bf16.msra.mxu0 0
        %1735 = vmatprep.subr.bf16.mxu0 0
        %1736 = vmatpush1.bf16.msra.mxu0 0
        %1737 = vmatprep.subr.bf16.mxu0 0
        %1738 = vmatpush1.bf16.msra.mxu0 0
        %1739 = vmatprep.subr.bf16.mxu0 0
        %1740 = vmatpush1.bf16.msra.mxu0 0
        %1741 = vmatprep.subr.bf16.mxu0 0
        %1742 = vmatpush1.bf16.msra.mxu0 0
        %1743 = vmatprep.subr.bf16.mxu0 0
        %1744 = vmatpush1.bf16.msra.mxu0 0
        %1745 = vmatprep.subr.bf16.mxu0 0
        %1746 = vmatpush1.bf16.msra.mxu0 0
        %1747 = vmatprep.subr.bf16.mxu0 0
        %1748 = vmatpush1.bf16.msra.mxu0 0
        %1749 = vmatprep.subr.bf16.mxu0 0
        %1750 = vmatpush1.bf16.msra.mxu0 0
        %1751 = vmatprep.subr.bf16.mxu0 0
        %1752 = vmatpush1.bf16.msra.mxu0 0
        %1753 = vmatprep.mubr.bf16.mxu0 0
        %1754 = vmatmul.mubr.bf16.gmra.mrb[0].mxu0 %v1716
        %v1755 = vpop.f32.mrb[0].mxu0
        %v1756 = vadd.f32 0.0, %v1755
        %v1757 = vpop.f32.mrb[0].mxu0
        %v1758 = vpop.f32.mrb[0].mxu0
        %v1759 = vadd.f32 0.0, %v1758
        %v1760 = vpop.f32.mrb[0].mxu0
        %1761 = vmatprep.mubr.bf16.mxu0 0
        %1762 = vmatmul.mubr.bf16.gmra.mrb[0].mxu0 %v1719
        %v1763 = vpop.f32.mrb[0].mxu0
        %v1764 = vadd.f32 0.0, %v1763
        %v1765 = vpop.f32.mrb[0].mxu0
        %v1766 = vpop.f32.mrb[0].mxu0
        %v1767 = vadd.f32 0.0, %v1766
        %v1768 = vpop.f32.mrb[0].mxu0
        %1769 = vdwg.mxu0
        %v1770 = vadd.f32 %v1666, %v1756
        %v1771 = vadd.f32 %v1669, %v1759
        %v1772 = vadd.f32 %v1674, %v1764
        %v1773 = vadd.f32 %v1677, %v1767
        %s1774 = scalar_lea.vmem %s3, 3
        %v1775 = vld [vmem:[%s1774] sm:$0x1]
        %v1777 = vlaneseq
        %v1778 = vshrl.u32 %v1777, 7
        %v1779 = vsub.s32 0, %v1778
        %v1780 = vrot.slane %v1775, %v1779
        %v1782 = vadd.f32 %v1770, %v1780
        %v1783 = vadd.f32 %v1771, %v1780
        %v1784 = vadd.f32 %v1772, %v1780
        %v1785 = vadd.f32 %v1773, %v1780
        %vm1786 = vcmp.gt.f32.partialorder %v1782, 0.0
        %vm1787 = vcmp.gt.f32.partialorder %v1783, 0.0
        %vm1788 = vcmp.gt.f32.partialorder %v1784, 0.0
        %vm1789 = vcmp.gt.f32.partialorder %v1785, 0.0
        %v1790 = vmin.f32 %v1782, 0.0
        %v1791 = vmin.f32 %v1783, 0.0
        %v1792 = vmin.f32 %v1784, 0.0
        %v1793 = vmin.f32 %v1785, 0.0
        %v1794 = vmul.f32 %v1790, 1.442695
        %v1795 = vpow.pop %v1794
        %v1796 = vmul.f32 %v1791, 1.442695
        %v1797 = vpow.pop %v1796
        %v1798 = vmul.f32 %v1792, 1.442695
        %v1799 = vpow.pop %v1798
        %v1800 = vmul.f32 %v1793, 1.442695
        %v1801 = vpow.pop %v1800
        %v1802 = vsub.f32 %v1795, 1.0
        %v1803 = vsub.f32 %v1797, 1.0
        %v1804 = vsub.f32 %v1799, 1.0
        %v1805 = vsub.f32 %v1801, 1.0
        %v1806 = vsel %vm1786, %v1782, %v1802
        %v1807 = vsel %vm1787, %v1783, %v1803
        %v1808 = vsel %vm1788, %v1784, %v1804
        %v1809 = vsel %vm1789, %v1785, %v1805
        %vm1814 = vcmask 1042432
        %v1815 = vrot.slane %v1806, 5
        %v1816 = vrot.slane %v1807, 5
        %v1817 = vsel %vm1814, %v1815, %v1816
        %v1818 = vrot.slane %v1808, 5
        %v1819 = vsel %vm1814, %v1816, %v1818
        %v1820 = vrot.slane %v1809, 5
        %v1821 = vsel %vm1814, %v1818, %v1820
        %v1826 = vsel %vm700, %v1815, 0.0
        %v1827 = vsel %vm701, %v1817, 0.0
        %v1828 = vsel %vm702, %v1819, 0.0
        %v1829 = vsel %vm703, %v1821, 0.0
        %v1830 = vpack.c.bf16 %v1827, %v1826
        %v1831 = vpack.c.bf16 %v1829, %v1828
        %vm1834 = vcmask 1043456
        %v1835 = vrot.slane %v1830, 4
        %v1836 = vrot.slane %v1831, 4
        %v1837 = vsel %vm1834, %v1835, %v1836
        %vm1841 = vcmask 261125
        %vm1842 = vsmask.f32 7958
        %vm1843 = vmand %vm1841, %vm1842
        %v1844 = vsel %vm1843, %v1835, %v1495
        %1845 = vst [vmem:[#allocation2] sm:$0xe0] %v1844
        %1846 = vst.msk [vmem:[#allocation2 + $0x8] sm:$0xff] %vm740, %v1837
        %vm1847 = vcmask 256000
        %vm1848 = vmand %vm1847, %vm1502
        %v1849 = vld [vmem:[#allocation2 + $0x10] sm:$0x7]
        %v1850 = vsel %vm1848, %v1836, %v1849
        %1851 = vst [vmem:[#allocation2 + $0x10] sm:$0x7] %v1850
        %v1852 = vld [vmem:[#allocation2] sm:$0xe0]
        %v1853 = vld [vmem:[#allocation2 + $0x8] sm:$0x3f]
        %s1854 = scalar_lea.vmem %s2, 144
        %v1855 = vld [vmem:[%s1854] sm:$0xf]
        %v1856 = vld [vmem:[%s1854 + $0x4] sm:$0xf]
        %v1857 = vld [vmem:[%s1854 + $0x8] sm:$0xf]
        %v1858 = vld [vmem:[%s1854 + $0xc] sm:$0xf]
        %v1859 = vld [vmem:[#allocation2 + $0x8] sm:$0xff]
        %s1860 = scalar_lea.vmem %s2, 160
        %v1861 = vld [vmem:[%s1860] sm:$0xf]
        %v1862 = vld [vmem:[%s1860 + $0x4] sm:$0xf]
        %v1863 = vld [vmem:[%s1860 + $0x8] sm:$0xf]
        %v1864 = vld [vmem:[%s1860 + $0xc] sm:$0xf]
        %v1869 = vunpack.c.l.b16 %v1861
        %v1870 = vunpack.c.l.b16 %v1862
        %v1871 = vunpack.c.l.b16 %v1863
        %v1872 = vunpack.c.l.b16 %v1864
        %v1873 = vpack.c.b16 %v1870, %v1869
        %v1874 = vpack.c.b16 %v1872, %v1871
        %v1878 = vsel %vm740, %v1859, 0
        %1880 = vmatprep.subr.bf16.mxu0 0
        %1881 = vmatpush1.bf16.msra.mxu0 %v1873
        %1882 = vmatprep.subr.bf16.mxu0 0
        %1883 = vmatpush1.bf16.msra.mxu0 %v1874
        %1884 = vmatprep.subr.bf16.mxu0 0
        %1885 = vmatpush1.bf16.msra.mxu0 0
        %1886 = vmatprep.subr.bf16.mxu0 0
        %1887 = vmatpush1.bf16.msra.mxu0 0
        %1888 = vmatprep.subr.bf16.mxu0 0
        %1889 = vmatpush1.bf16.msra.mxu0 0
        %1890 = vmatprep.subr.bf16.mxu0 0
        %1891 = vmatpush1.bf16.msra.mxu0 0
        %1892 = vmatprep.subr.bf16.mxu0 0
        %1893 = vmatpush1.bf16.msra.mxu0 0
        %1894 = vmatprep.subr.bf16.mxu0 0
        %1895 = vmatpush1.bf16.msra.mxu0 0
        %1896 = vmatprep.subr.bf16.mxu0 0
        %1897 = vmatpush1.bf16.msra.mxu0 0
        %1898 = vmatprep.subr.bf16.mxu0 0
        %1899 = vmatpush1.bf16.msra.mxu0 0
        %1900 = vmatprep.subr.bf16.mxu0 0
        %1901 = vmatpush1.bf16.msra.mxu0 0
        %1902 = vmatprep.subr.bf16.mxu0 0
        %1903 = vmatpush1.bf16.msra.mxu0 0
        %1904 = vmatprep.subr.bf16.mxu0 0
        %1905 = vmatpush1.bf16.msra.mxu0 0
        %1906 = vmatprep.subr.bf16.mxu0 0
        %1907 = vmatpush1.bf16.msra.mxu0 0
        %1908 = vmatprep.subr.bf16.mxu0 0
        %1909 = vmatpush1.bf16.msra.mxu0 0
        %1910 = vmatprep.subr.bf16.mxu0 0
        %1911 = vmatpush1.bf16.msra.mxu0 0
        %1912 = vmatprep.mubr.bf16.mxu0 0
        %1913 = vmatmul.mubr.bf16.gmra.mrb[0].mxu0 %v1878
        %v1914 = vpop.f32.mrb[0].mxu0
        %v1915 = vadd.f32 0.0, %v1914
        %v1916 = vpop.f32.mrb[0].mxu0
        %v1917 = vpop.f32.mrb[0].mxu0
        %v1918 = vadd.f32 0.0, %v1917
        %v1919 = vpop.f32.mrb[0].mxu0
        %1920 = vdwg.mxu0
        %v1922 = vshrl.u32 %v1852, 16
        %v1924 = vrot.slane %v1922, 5
        %v1925 = vshll.u32 %v1852, 16
        %v1927 = vrot.slane %v1925, 6
        %v1928 = vor.u32 %v1924, %v1927
        %v1930 = vshrl.u32 %v1853, 16
        %v1932 = vrot.slane %v1930, 5
        %v1933 = vshll.u32 %v1853, 16
        %v1935 = vrot.slane %v1933, 6
        %v1936 = vor.u32 %v1932, %v1935
        %v1937 = vsel %vm1502, %v1928, %v1936
        %v1942 = vunpack.c.l.b16 %v1855
        %v1943 = vunpack.c.l.b16 %v1856
        %v1944 = vunpack.c.l.b16 %v1857
        %v1945 = vunpack.c.l.b16 %v1858
        %v1946 = vpack.c.b16 %v1943, %v1942
        %v1947 = vpack.c.b16 %v1945, %v1944
        %v1951 = vsel %vm740, %v1937, 0
        %1953 = vmatprep.subr.bf16.mxu0 0
        %1954 = vmatpush1.bf16.msra.mxu0 %v1946
        %1955 = vmatprep.subr.bf16.mxu0 0
        %1956 = vmatpush1.bf16.msra.mxu0 %v1947
        %1957 = vmatprep.subr.bf16.mxu0 0
        %1958 = vmatpush1.bf16.msra.mxu0 0
        %1959 = vmatprep.subr.bf16.mxu0 0
        %1960 = vmatpush1.bf16.msra.mxu0 0
        %1961 = vmatprep.subr.bf16.mxu0 0
        %1962 = vmatpush1.bf16.msra.mxu0 0
        %1963 = vmatprep.subr.bf16.mxu0 0
        %1964 = vmatpush1.bf16.msra.mxu0 0
        %1965 = vmatprep.subr.bf16.mxu0 0
        %1966 = vmatpush1.bf16.msra.mxu0 0
        %1967 = vmatprep.subr.bf16.mxu0 0
        %1968 = vmatpush1.bf16.msra.mxu0 0
        %1969 = vmatprep.subr.bf16.mxu0 0
        %1970 = vmatpush1.bf16.msra.mxu0 0
        %1971 = vmatprep.subr.bf16.mxu0 0
        %1972 = vmatpush1.bf16.msra.mxu0 0
        %1973 = vmatprep.subr.bf16.mxu0 0
        %1974 = vmatpush1.bf16.msra.mxu0 0
        %1975 = vmatprep.subr.bf16.mxu0 0
        %1976 = vmatpush1.bf16.msra.mxu0 0
        %1977 = vmatprep.subr.bf16.mxu0 0
        %1978 = vmatpush1.bf16.msra.mxu0 0
        %1979 = vmatprep.subr.bf16.mxu0 0
        %1980 = vmatpush1.bf16.msra.mxu0 0
        %1981 = vmatprep.subr.bf16.mxu0 0
        %1982 = vmatpush1.bf16.msra.mxu0 0
        %1983 = vmatprep.subr.bf16.mxu0 0
        %1984 = vmatpush1.bf16.msra.mxu0 0
        %1985 = vmatprep.mubr.bf16.mxu0 0
        %1986 = vmatmul.mubr.bf16.gmra.mrb[0].mxu0 %v1951
        %v1987 = vpop.f32.mrb[0].mxu0
        %v1988 = vadd.f32 %v1915, %v1987
        %v1989 = vpop.f32.mrb[0].mxu0
        %v1990 = vpop.f32.mrb[0].mxu0
        %v1991 = vadd.f32 %v1918, %v1990
        %v1992 = vpop.f32.mrb[0].mxu0
        %1993 = vdwg.mxu0
        %v1994 = vld [vmem:[#allocation2 + $0x8] sm:$0xfc]
        %v1995 = vld [vmem:[#allocation2 + $0x10] sm:$0x7]
        %s1996 = scalar_lea.vmem %s2, 176
        %v1997 = vld [vmem:[%s1996] sm:$0xf]
        %v1998 = vld [vmem:[%s1996 + $0x4] sm:$0xf]
        %v1999 = vld [vmem:[%s1996 + $0x8] sm:$0xf]
        %v2000 = vld [vmem:[%s1996 + $0xc] sm:$0xf]
        %vm2001 = vsmask.f32 5376
        %v2003 = vshrl.u32 %v1994, 16
        %v2005 = vrot.slane %v2003, 2
        %v2006 = vshll.u32 %v1994, 16
        %v2008 = vrot.slane %v2006, 3
        %v2009 = vor.u32 %v2005, %v2008
        %v2011 = vshrl.u32 %v1995, 16
        %v2013 = vrot.slane %v2011, 2
        %v2014 = vshll.u32 %v1995, 16
        %v2016 = vrot.slane %v2014, 3
        %v2017 = vor.u32 %v2013, %v2016
        %v2018 = vsel %vm2001, %v2009, %v2017
        %v2023 = vunpack.c.l.b16 %v1997
        %v2024 = vunpack.c.l.b16 %v1998
        %v2025 = vunpack.c.l.b16 %v1999
        %v2026 = vunpack.c.l.b16 %v2000
        %v2027 = vpack.c.b16 %v2024, %v2023
        %v2028 = vpack.c.b16 %v2026, %v2025
        %v2032 = vsel %vm740, %v2018, 0
        %2034 = vmatprep.subr.bf16.mxu0 0
        %2035 = vmatpush1.bf16.msra.mxu0 %v2027
        %2036 = vmatprep.subr.bf16.mxu0 0
        %2037 = vmatpush1.bf16.msra.mxu0 %v2028
        %2038 = vmatprep.subr.bf16.mxu0 0
        %2039 = vmatpush1.bf16.msra.mxu0 0
        %2040 = vmatprep.subr.bf16.mxu0 0
        %2041 = vmatpush1.bf16.msra.mxu0 0
        %2042 = vmatprep.subr.bf16.mxu0 0
        %2043 = vmatpush1.bf16.msra.mxu0 0
        %2044 = vmatprep.subr.bf16.mxu0 0
        %2045 = vmatpush1.bf16.msra.mxu0 0
        %2046 = vmatprep.subr.bf16.mxu0 0
        %2047 = vmatpush1.bf16.msra.mxu0 0
        %2048 = vmatprep.subr.bf16.mxu0 0
        %2049 = vmatpush1.bf16.msra.mxu0 0
        %2050 = vmatprep.subr.bf16.mxu0 0
        %2051 = vmatpush1.bf16.msra.mxu0 0
        %2052 = vmatprep.subr.bf16.mxu0 0
        %2053 = vmatpush1.bf16.msra.mxu0 0
        %2054 = vmatprep.subr.bf16.mxu0 0
        %2055 = vmatpush1.bf16.msra.mxu0 0
        %2056 = vmatprep.subr.bf16.mxu0 0
        %2057 = vmatpush1.bf16.msra.mxu0 0
        %2058 = vmatprep.subr.bf16.mxu0 0
        %2059 = vmatpush1.bf16.msra.mxu0 0
        %2060 = vmatprep.subr.bf16.mxu0 0
        %2061 = vmatpush1.bf16.msra.mxu0 0
        %2062 = vmatprep.subr.bf16.mxu0 0
        %2063 = vmatpush1.bf16.msra.mxu0 0
        %2064 = vmatprep.subr.bf16.mxu0 0
        %2065 = vmatpush1.bf16.msra.mxu0 0
        %2066 = vmatprep.mubr.bf16.mxu0 0
        %2067 = vmatmul.mubr.bf16.gmra.mrb[0].mxu0 %v2032
        %v2068 = vpop.f32.mrb[0].mxu0
        %v2069 = vadd.f32 0.0, %v2068
        %v2070 = vpop.f32.mrb[0].mxu0
        %v2071 = vpop.f32.mrb[0].mxu0
        %v2072 = vadd.f32 0.0, %v2071
        %v2073 = vpop.f32.mrb[0].mxu0
        %2074 = vdwg.mxu0
        %v2075 = vadd.f32 %v1988, %v2069
        %v2076 = vadd.f32 %v1991, %v2072
        %s2077 = scalar_lea.vmem %s3, 4
        %v2078 = vld [vmem:[%s2077] sm:$0x1]
        %v2080 = vlaneseq
        %v2081 = vshrl.u32 %v2080, 7
        %v2082 = vsub.s32 0, %v2081
        %v2083 = vrot.slane %v2078, %v2082
        %v2085 = vadd.f32 %v2075, %v2083
        %v2086 = vadd.f32 %v2076, %v2083
        %vm2087 = vcmp.gt.f32.partialorder %v2085, 0.0
        %vm2088 = vcmp.gt.f32.partialorder %v2086, 0.0
        %v2089 = vmin.f32 %v2085, 0.0
        %v2090 = vmin.f32 %v2086, 0.0
        %v2091 = vmul.f32 %v2089, 1.442695
        %v2092 = vpow.pop %v2091
        %v2093 = vmul.f32 %v2090, 1.442695
        %v2094 = vpow.pop %v2093
        %v2095 = vsub.f32 %v2092, 1.0
        %v2096 = vsub.f32 %v2094, 1.0
        %v2097 = vsel %vm2087, %v2085, %v2095
        %v2098 = vsel %vm2088, %v2086, %v2096
        %2099 = vst.msk [vmem:[%s209] sm:$0xff] %vm740, %v2097
        %2100 = vst.msk [vmem:[%s209 + $0x8] sm:$0xff] %vm740, %v2098
        %s2101 = sand.u32 %s131, 1
        %s2102 = scalar_lea.sflag [#allocation4], %s2101
        %s2103 = sand.u32 %s131, 1
        %s2104 = smul.addr %s2103, 16
        %s2105 = scalar_lea.vmem [#allocation3], %s2104
        // Predicated region
        $region37: #{local_features_forward.1} parent=35 // pred_check
          %p2106 = pneg %p141
        $region38: #{local_features_forward.1} parent=35 // pred_check_branch
          %2108 = sbr.rel (%p2106) target = $region40
        $region39: #{local_features_forward.1} parent=35 // pred_region
          %s2109 = smul.u32 2, %s23
          %s2111 = ssub.s32 256, 256
          %2112 = vsyncadd %s2102, %s2111
          %s2113 = smul.addr %s22, 2
          %s2114 = sadd.s32 %s2109, %s2113
          %s2115 = smul.addr %s2114, 128
          %s2116 = scalar_lea.hbm %s4, %s2115
          %s2117 = sshll.u32 %s2105, 4
          %s2118 = int_to_ptr.vmem [resolvable:$true] %s2117
          %2123 = dma.vmem_to_hbm [thread:$0]  %s2118, 256, %s2116, %s2102, 128, 128, 8
        $region40: #{local_features_forward.1} parent=35 // pred_fallthru
          _
      $region36: #{local_features_forward.1} parent=5 // pred_fallthru
        _
      %p2124 = scmp.le.s32.totalorder 2, %s13
      // Predicated region
      $region41: #{local_features_forward.1} parent=5 // pred_check
        %p2125 = pneg %p2124
      $region42: #{local_features_forward.1} parent=5 // pred_check_branch
        %2127 = sbr.rel (%p2125) target = $region44
      $region43: #{local_features_forward.1} parent=5 // pred_region
        %s2128 = ssub.s32 %s13, 2
        // Predicated region
        $region45: #{local_features_forward.1} parent=43 // pred_check
          %p2129 = pneg %p147
        $region46: #{local_features_forward.1} parent=43 // pred_check_branch
          %2131 = sbr.rel (%p2129) target = $region48
        $region47: #{local_features_forward.1} parent=43 // pred_region
          %s2132 = sand.u32 %s132, 1
          %s2133 = scalar_lea.sflag [#allocation4], %s2132
          %s2134 = sand.u32 %s132, 1
          %s2135 = smul.addr %s2134, 16
          %s2136 = scalar_lea.vmem [#allocation3], %s2135
          %2137 = dma.done %s2133, 256
        $region48: #{local_features_forward.1} parent=43 // pred_fallthru
          _
      $region44: #{local_features_forward.1} parent=5 // pred_fallthru
        _
    $region6: #{local_features_forward.1} parent=1 // loop_footer
      %s17 = sadd.s32 1, %s13
    $region7: #{local_features_forward.1} parent=1 // loop_footer_branch
      %12 = sbr.rel target = $region3
    $region8: #{local_features_forward.1} parent=1 // loop_exit
      _
    %2138 = vsyncpa [#allocation4], 1
    %s2139 = scalar_lea.sflag [#allocation4], 1
    %2140 = vsyncpa %s2139, 1

</llo_original>
